<compile_context>
chip_gen: v5e
topology: v5e:2x2
jax: 0.10.0
libtpu: 0.0.40
codegen_flags: <defaults>
</compile_context>

<pallas_src>
import functools
import math

import numpy as np
import jax
import jax.numpy as jnp
from jax.experimental import pallas as pl
from jax.experimental.pallas import tpu as pltpu


def _res_mha_kernel(*refs, n_head, h_size, block_q, block_kv, is_self, is_decoder,
                    share_kv, compute_dtype):
    if share_kv:
        (q_ref, wq_ref, wkv_ref, bq_ref, bkv_ref, wo_ref, bo_ref, g_ref, bta_ref,
         out_ref, qh_sc, m_sc, l_sc, acc_sc) = refs
        kv_ref = q_ref  # unused on this path; kv tile == q tile
    else:
        (q_ref, kv_ref, wq_ref, wkv_ref, bq_ref, bkv_ref, wo_ref, bo_ref, g_ref, bta_ref,
         out_ref, qh_sc, m_sc, l_sc, acc_sc) = refs

    f32 = jnp.float32
    H, Dh = n_head, h_size
    HD = H * Dh
    ki = pl.program_id(2)
    nk = pl.num_programs(2)
    gamma = g_ref[...]            # (1, E) f32
    beta = bta_ref[...]           # (1, E) f32

    def layer_norm(x):            # x: (T, E) f32
        mu = jnp.mean(x, axis=-1, keepdims=True)
        var = jnp.mean(jnp.square(x - mu), axis=-1, keepdims=True)
        return (x - mu) * jax.lax.rsqrt(var + 1e-5) * gamma + beta

    def split_heads(x2d, off=0):
        # (T, H*Dh) slab -> (H, T, Dh). Static lane slices + leading-dim stack: cheap data
        # movement; the projection itself stays a single lane-dense matmul.
        return jnp.stack(
            [x2d[:, off + h * Dh: off + (h + 1) * Dh] for h in range(H)], axis=0)

    if share_kv:
        # Single-tile self-attention: LayerNorm(q) computed once, reused for the kv path.
        qn_shared = layer_norm(q_ref[0].astype(f32)).astype(compute_dtype)

    @pl.when(ki == 0)
    def _init():
        m_sc[...] = jnp.full_like(m_sc, -1e30)
        l_sc[...] = jnp.zeros_like(l_sc)
        acc_sc[...] = jnp.zeros_like(acc_sc)
        if share_kv:
            qn = qn_shared
        else:
            qn = layer_norm(q_ref[0].astype(f32)).astype(compute_dtype)
        # Merged, lane-dense Q projection; softmax 1/sqrt(h) scale pre-folded into wq/bq.
        qp = jnp.dot(qn, wq_ref[...], preferred_element_type=f32) + bq_ref[...]
        qh_sc[...] = split_heads(qp.astype(compute_dtype))            # (H, tq, Dh)

    q_start = pl.program_id(1) * block_q
    kv_start = ki * block_kv

    def _attend():
        if share_kv:
            kvn = qn_shared
        elif is_self:
            kvn = layer_norm(kv_ref[0].astype(f32)).astype(compute_dtype)
        else:
            kvn = kv_ref[0].astype(compute_dtype)                     # cross-attn: no LN
        # Fused K/V projection: one matmul, lane-dense output width 2*H*Dh.
        kvp = (jnp.dot(kvn, wkv_ref[...], preferred_element_type=f32)
               + bkv_ref[...]).astype(compute_dtype)                  # (tkv, 2HD)
        kh = split_heads(kvp)                                         # (H, tkv, Dh)
        vh = split_heads(kvp, HD)                                     # (H, tkv, Dh)

        s = jnp.einsum('hqd,hkd->hqk', qh_sc[...], kh,
                       preferred_element_type=f32)                    # (H, tq, tkv) f32

        if is_decoder and is_self:
            row = q_start + jax.lax.broadcasted_iota(jnp.int32, (block_q, block_kv), 0)
            col = kv_start + jax.lax.broadcasted_iota(jnp.int32, (block_q, block_kv), 1)
            s = jnp.where((row >= col)[None], s, -1e30)               # single select

        m_prev = m_sc[...]
        m_new = jnp.maximum(m_prev, jnp.max(s, axis=-1, keepdims=True))
        alpha = jnp.exp(m_prev - m_new)
        p = jnp.exp(s - m_new)                                        # unnormalized probs
        l_sc[...] = alpha * l_sc[...] + jnp.sum(p, axis=-1, keepdims=True)
        acc_sc[...] = alpha * acc_sc[...] + jnp.einsum(
            'hqk,hkd->hqd', p.astype(compute_dtype), vh, preferred_element_type=f32)
        m_sc[...] = m_new

    if is_decoder and is_self:
        # Skip kv tiles entirely in the future of this q tile (causal tile-skipping).
        pl.when(kv_start <= q_start + block_q - 1)(_attend)
    else:
        _attend()

    @pl.when(ki == nk - 1)
    def _finalize():
        # Normalize after the PV matmul (cheaper than scaling p); reciprocal -> EUP slot.
        ctx = acc_sc[...] * pl.reciprocal(l_sc[...], approx=True)     # (H, tq, Dh) f32
        ctx2 = jnp.concatenate(
            [ctx[h].astype(compute_dtype) for h in range(H)], axis=-1)   # (tq, H*Dh)
        out = jnp.dot(ctx2, wo_ref[...], preferred_element_type=f32) + bo_ref[...]
        out_ref[0] = (out + q_ref[0].astype(f32)).astype(out_ref.dtype)  # residual


def _prep_params(params, n_head, h_size, n_emb, compute_dtype):
    wq, bq, wkv, bkv, wo, bo, ln_g, ln_b = params
    HD = n_head * h_size
    f32 = jnp.float32
    scale = 1.0 / math.sqrt(h_size)
    # nn.Linear convention: y = x @ W.T + b with W (out, in). Merge heads into lane-dense
    # slabs (E, HD) / (E, 2HD) / (HD, E); fold the softmax 1/sqrt(h) scale into Wq and bq.
    wq_m = (wq.astype(f32).T * scale).astype(compute_dtype)          # (E, HD)
    wkv_m = wkv.astype(f32).T.astype(compute_dtype)                  # (E, 2HD), k then v
    wo_m = wo.astype(f32).T.astype(compute_dtype)                    # (HD, E)
    bq_m = (bq.astype(f32) * scale).reshape(1, HD)
    bkv_m = bkv.astype(f32).reshape(1, 2 * HD)
    bo_m = bo.astype(f32).reshape(1, n_emb)
    g_m = ln_g.astype(f32).reshape(1, n_emb)
    b_m = ln_b.astype(f32).reshape(1, n_emb)
    return wq_m, wkv_m, wo_m, bq_m, bkv_m, bo_m, g_m, b_m


def _pick_block(total, target):
    """Largest block <= target that divides `total` and is a multiple of 8 (sublane),
    falling back to the full extent (block == array dim is always legal)."""
    if total <= target:
        return total
    for cand in range(target, 7, -1):
        if cand % 8 == 0 and total % cand == 0:
            return cand
    return total


def _vmem_limit_bytes(E, HD, H, Dh, bq, bkv, in_dtype, compute_dtype):
    """Rough padded footprint of one grid step, doubled for headroom, clamped."""
    pad = lambda n, m: -(-n // m) * m
    cd = np.dtype(compute_dtype).itemsize
    ind = np.dtype(in_dtype).itemsize
    lE, lHD, l2HD = pad(E, 128), pad(HD, 128), pad(2 * HD, 128)
    lDh, lkv = pad(Dh, 128), pad(bkv, 128)
    sq, skv = pad(bq, 8), pad(bkv, 8)
    weights = cd * (E * lHD + E * l2HD + HD * lE)                     # single-buffered slabs
    biases = 4 * 8 * (lHD + l2HD + 3 * lE)
    acts = 2 * ind * (sq * lE * 2 + skv * lE)                         # q, out, kv (2x buf)
    scratch = H * sq * (cd * lDh + 4 * lDh + 2 * 4 * 128)
    transient = 4 * H * sq * lkv * 3 + cd * (skv * l2HD * 2 + sq * lHD * 2)
    est = weights + biases + acts + scratch + transient
    return int(min(100 * 1024 * 1024, max(32 * 1024 * 1024, 2 * est)))


def res_mh_atten(q, kv, params, *, n_head, h_size, is_decoder=False, is_self=None,
                 block_q=256, block_kv=256, compute_dtype=jnp.bfloat16,
                 single_buffer_weights=True):
    """q: (B, qT, E), kv: (B, kvT, E) -> (B, qT, E).

    `is_self` mirrors torch.equal(kv, q). Pass it explicitly under jit/tracing; if None it
    is decided from the concrete input values (host-side check, forces a sync).
    """
    B, qT, E = q.shape
    _, kvT, _ = kv.shape
    H, Dh = n_head, h_size
    HD = H * Dh
    if is_self is None:
        is_self = (q.shape == kv.shape) and bool(
            np.array_equal(np.asarray(q), np.asarray(kv)))

    bq_blk = _pick_block(qT, block_q)
    bkv_blk = _pick_block(kvT, block_kv)
    nq, nk = qT // bq_blk, kvT // bkv_blk
    # Single-tile self-attention: drop the kv operand entirely and reuse LayerNorm(q).
    share_kv = bool(is_self and nq == 1 and nk == 1 and qT == kvT)

    (wq_m, wkv_m, wo_m, bq_m, bkv_m, bo_m, g_m, b_m) = _prep_params(
        params, H, Dh, E, compute_dtype)

    kernel = functools.partial(
        _res_mha_kernel, n_head=H, h_size=Dh, block_q=bq_blk, block_kv=bkv_blk,
        is_self=is_self, is_decoder=is_decoder, share_kv=share_kv,
        compute_dtype=compute_dtype)

    operands = [q]
    if not share_kv:
        operands.append(q if is_self else kv)   # self-attn kv tiles come from q itself
    operands += [wq_m, wkv_m, bq_m, bkv_m, wo_m, bo_m, g_m, b_m]

    vmem_limit = _vmem_limit_bytes(E, HD, H, Dh, bq_blk, bkv_blk, q.dtype, compute_dtype)

    def build(single_buf):
        const_kwargs = dict(pipeline_mode=pl.Buffered(1)) if single_buf else {}

        def cspec(shape):  # constant (grid-invariant) weight / bias block
            return pl.BlockSpec(shape, lambda b, qi, ki: (0, 0), **const_kwargs)

        in_specs = [pl.BlockSpec((1, bq_blk, E), lambda b, qi, ki: (b, qi, 0))]
        if not share_kv:
            in_specs.append(pl.BlockSpec((1, bkv_blk, E), lambda b, qi, ki: (b, ki, 0)))
        in_specs += [cspec((E, HD)), cspec((E, 2 * HD)), cspec((1, HD)),
                     cspec((1, 2 * HD)), cspec((HD, E)), cspec((1, E)),
                     cspec((1, E)), cspec((1, E))]

        grid_spec = pltpu.PrefetchScalarGridSpec(
            num_scalar_prefetch=0,
            grid=(B, nq, nk),
            in_specs=in_specs,
            out_specs=pl.BlockSpec((1, bq_blk, E), lambda b, qi, ki: (b, qi, 0)),
            scratch_shapes=[
                pltpu.VMEM((H, bq_blk, Dh), compute_dtype),   # per-head Q (reused over kv)
                pltpu.VMEM((H, bq_blk, 1), jnp.float32),      # running max
                pltpu.VMEM((H, bq_blk, 1), jnp.float32),      # running denominator
                pltpu.VMEM((H, bq_blk, Dh), jnp.float32),     # unnormalized PV accumulator
            ])
        return pl.pallas_call(
            kernel,
            out_shape=jax.ShapeDtypeStruct((B, qT, E), q.dtype),
            grid_spec=grid_spec,
            compiler_params=pltpu.CompilerParams(
                dimension_semantics=("parallel", "parallel", "arbitrary"),
                vmem_limit_bytes=vmem_limit),
        )

    try:
        return build(single_buffer_weights)(*operands)
    except Exception:
        if not single_buffer_weights:
            raise
        # Fallback for jax versions that reject pipeline_mode single-buffering.
        return build(False)(*operands)


def _reference(q, kv, params, *, n_head, h_size, is_decoder):
    """Pure-JAX reference mirroring the PyTorch forward (dropout = identity), all f32."""
    wq, bq, wkv, bkv, wo, bo, ln_g, ln_b = params
    B, qT, E = q.shape
    _, kvT, _ = kv.shape
    HD = n_head * h_size
    is_self = bool(np.array_equal(np.asarray(q), np.asarray(kv)))

    def ln(x):
        mu = jnp.mean(x, axis=-1, keepdims=True)
        var = jnp.mean((x - mu) ** 2, axis=-1, keepdims=True)
        return (x - mu) * jax.lax.rsqrt(var + 1e-5) * ln_g + ln_b

    oq = q
    qn = ln(q)
    kvn = ln(kv) if is_self else kv
    qp = qn @ wq.T + bq
    kvp = kvn @ wkv.T + bkv
    kp, vp = kvp[..., :HD], kvp[..., HD:]
    qp = qp.reshape(B, qT, n_head, h_size).transpose(0, 2, 1, 3)
    kp = kp.reshape(B, kvT, n_head, h_size).transpose(0, 2, 1, 3)
    vp = vp.reshape(B, kvT, n_head, h_size).transpose(0, 2, 1, 3)
    attn = jnp.einsum("bhqd,bhkd->bhqk", qp, kp) / math.sqrt(h_size)
    if is_decoder and is_self:
        mask = jnp.tril(jnp.ones((qT, kvT), dtype=bool))
        attn = jnp.where(mask, attn, -jnp.inf)
    attn = jax.nn.softmax(attn, axis=-1)
    ctx = jnp.einsum("bhqk,bhkd->bhqd", attn, vp)
    ctx = ctx.transpose(0, 2, 1, 3).reshape(B, qT, HD)
    return ctx @ wo.T + bo + oq


if __name__ == "__main__":
    # Small shapes consistent with the module.
    B, T, n_emb = 2, 8, 32
    n_head, h_size = 4, 8
    HD = n_head * h_size

    key = jax.random.PRNGKey(0)
    k = jax.random.split(key, 8)
    q = jax.random.normal(k[0], (B, T, n_emb), dtype=jnp.float32)

    params = (
        0.02 * jax.random.normal(k[1], (HD, n_emb), dtype=jnp.float32),      # Wq
        0.02 * jax.random.normal(k[2], (HD,), dtype=jnp.float32),            # bq
        0.02 * jax.random.normal(k[3], (2 * HD, n_emb), dtype=jnp.float32),  # Wkv
        0.02 * jax.random.normal(k[4], (2 * HD,), dtype=jnp.float32),        # bkv
        0.02 * jax.random.normal(k[5], (n_emb, HD), dtype=jnp.float32),      # Wo
        0.02 * jax.random.normal(k[6], (n_emb,), dtype=jnp.float32),         # bo
        jnp.ones((n_emb,), dtype=jnp.float32),                               # LN gamma
        jnp.zeros((n_emb,), dtype=jnp.float32),                              # LN beta
    )

    # 1) Self-attention, decoder (causal), single-tile path (shared LN(q), no kv operand).
    out = res_mh_atten(q, q, params, n_head=n_head, h_size=h_size,
                       is_decoder=True, is_self=True)
    out = jax.block_until_ready(out)
    ref = _reference(q, q, params, n_head=n_head, h_size=h_size, is_decoder=True)
    assert out.shape == (B, T, n_emb)
    assert bool(jnp.all(jnp.isfinite(out)))
    np.testing.assert_allclose(np.asarray(out), np.asarray(ref), rtol=2e-2, atol=2e-2)

    # 2) Cross-attention (kv != q): no LayerNorm on kv, no causal mask.
    kv = jax.random.normal(k[7], (B, T, n_emb), dtype=jnp.float32)
    out_x = res_mh_atten(q, kv, params, n_head=n_head, h_size=h_size,
                         is_decoder=True, is_self=False)
    out_x = jax.block_until_ready(out_x)
    ref_x = _reference(q, kv, params, n_head=n_head, h_size=h_size, is_decoder=True)
    np.testing.assert_allclose(np.asarray(out_x), np.asarray(ref_x), rtol=2e-2, atol=2e-2)

    # 3) Flash-tiled path: longer sequence, multiple q/kv tiles, causal tile-skipping.
    T2 = 32
    q2 = jax.random.normal(jax.random.PRNGKey(1), (B, T2, n_emb), dtype=jnp.float32)
    out_t = res_mh_atten(q2, q2, params, n_head=n_head, h_size=h_size,
                         is_decoder=True, is_self=True, block_q=8, block_kv=8)
    out_t = jax.block_until_ready(out_t)
    ref_t = _reference(q2, q2, params, n_head=n_head, h_size=h_size, is_decoder=True)
    np.testing.assert_allclose(np.asarray(out_t), np.asarray(ref_t), rtol=2e-2, atol=2e-2)

    print("KERNEL_OK")
</pallas_src>

<mosaic_0001>
module attributes {stable_mosaic.version = 11 : i64} {
  func.func @_res_mha_kernel(%arg0: i32, %arg1: i32, %arg2: i32, %arg3: memref<1x8x32xf32, #tpu.memory_space<vmem>>, %arg4: memref<32x32xbf16, #tpu.memory_space<vmem>>, %arg5: memref<32x64xbf16, #tpu.memory_space<vmem>>, %arg6: memref<1x32xf32, #tpu.memory_space<vmem>>, %arg7: memref<1x64xf32, #tpu.memory_space<vmem>>, %arg8: memref<32x32xbf16, #tpu.memory_space<vmem>>, %arg9: memref<1x32xf32, #tpu.memory_space<vmem>>, %arg10: memref<1x32xf32, #tpu.memory_space<vmem>>, %arg11: memref<1x32xf32, #tpu.memory_space<vmem>>, %arg12: memref<1x8x32xf32, #tpu.memory_space<vmem>>, %arg13: memref<4x8x8xbf16, #tpu.memory_space<vmem>>, %arg14: memref<4x8x1xf32, #tpu.memory_space<vmem>>, %arg15: memref<4x8x1xf32, #tpu.memory_space<vmem>>, %arg16: memref<4x8x8xf32, #tpu.memory_space<vmem>>) attributes {dimension_semantics = [#tpu.dimension_semantics<parallel>, #tpu.dimension_semantics<parallel>, #tpu.dimension_semantics<arbitrary>], iteration_bounds = array<i64: 2, 1, 1>, scalar_prefetch = 0 : i64, scratch_operands = 4 : i64, tpu.core_type = #tpu.core_type<tc>, window_params = [{transform_indices = @transform_0, window_bounds = array<i64: 1, 8, 32>}, {pipeline_mode = #tpu.pipeline_mode<synchronous>, transform_indices = @transform_1, window_bounds = array<i64: 32, 32>}, {pipeline_mode = #tpu.pipeline_mode<synchronous>, transform_indices = @transform_2, window_bounds = array<i64: 32, 64>}, {pipeline_mode = #tpu.pipeline_mode<synchronous>, transform_indices = @transform_3, window_bounds = array<i64: 1, 32>}, {pipeline_mode = #tpu.pipeline_mode<synchronous>, transform_indices = @transform_4, window_bounds = array<i64: 1, 64>}, {pipeline_mode = #tpu.pipeline_mode<synchronous>, transform_indices = @transform_5, window_bounds = array<i64: 32, 32>}, {pipeline_mode = #tpu.pipeline_mode<synchronous>, transform_indices = @transform_6, window_bounds = array<i64: 1, 32>}, {pipeline_mode = #tpu.pipeline_mode<synchronous>, transform_indices = @transform_7, window_bounds = array<i64: 1, 32>}, {pipeline_mode = #tpu.pipeline_mode<synchronous>, transform_indices = @transform_8, window_bounds = array<i64: 1, 32>}, {transform_indices = @transform_9, window_bounds = array<i64: 1, 8, 32>}]} {
    %c0 = arith.constant 0 : index
    %c0_0 = arith.constant 0 : index
    %0 = vector.load %arg10[%c0, %c0_0] : memref<1x32xf32, #tpu.memory_space<vmem>>, vector<1x32xf32>
    %c0_1 = arith.constant 0 : index
    %c0_2 = arith.constant 0 : index
    %1 = vector.load %arg11[%c0_1, %c0_2] : memref<1x32xf32, #tpu.memory_space<vmem>>, vector<1x32xf32>
    %c0_3 = arith.constant 0 : index
    %c0_4 = arith.constant 0 : index
    %c0_5 = arith.constant 0 : index
    %2 = vector.load %arg3[%c0_3, %c0_4, %c0_5] : memref<1x8x32xf32, #tpu.memory_space<vmem>>, vector<1x8x32xf32>
    %3 = vector.shape_cast %2 : vector<1x8x32xf32> to vector<8x32xf32>
    %cst = arith.constant dense<0.000000e+00> : vector<8xf32>
    %4 = vector.multi_reduction <add>, %3, %cst [1] : vector<8x32xf32> to vector<8xf32>
    %5 = vector.shape_cast %4 : vector<8xf32> to vector<8x1xf32>
    %cst_6 = arith.constant 3.200000e+01 : f32
    %6 = vector.broadcast %cst_6 : f32 to vector<8x1xf32>
    %7 = arith.divf %5, %6 : vector<8x1xf32>
    %8 = vector.broadcast %7 : vector<8x1xf32> to vector<8x32xf32>
    %9 = arith.subf %3, %8 : vector<8x32xf32>
    %10 = arith.mulf %9, %9 : vector<8x32xf32>
    %cst_7 = arith.constant dense<0.000000e+00> : vector<8xf32>
    %11 = vector.multi_reduction <add>, %10, %cst_7 [1] : vector<8x32xf32> to vector<8xf32>
    %12 = vector.shape_cast %11 : vector<8xf32> to vector<8x1xf32>
    %cst_8 = arith.constant 3.200000e+01 : f32
    %13 = vector.broadcast %cst_8 : f32 to vector<8x1xf32>
    %14 = arith.divf %12, %13 : vector<8x1xf32>
    %15 = vector.broadcast %7 : vector<8x1xf32> to vector<8x32xf32>
    %16 = arith.subf %3, %15 : vector<8x32xf32>
    %cst_9 = arith.constant 9.99999974E-6 : f32
    %17 = vector.broadcast %cst_9 : f32 to vector<8x1xf32>
    %18 = arith.addf %14, %17 : vector<8x1xf32>
    %19 = math.rsqrt %18 : vector<8x1xf32>
    %20 = vector.broadcast %19 : vector<8x1xf32> to vector<8x32xf32>
    %21 = arith.mulf %16, %20 : vector<8x32xf32>
    %22 = vector.broadcast %0 : vector<1x32xf32> to vector<8x32xf32>
    %23 = arith.mulf %21, %22 : vector<8x32xf32>
    %24 = vector.broadcast %1 : vector<1x32xf32> to vector<8x32xf32>
    %25 = arith.addf %23, %24 : vector<8x32xf32>
    %26 = arith.truncf %25 : vector<8x32xf32> to vector<8x32xbf16>
    %c0_i32 = arith.constant 0 : i32
    %27 = arith.cmpi eq, %arg2, %c0_i32 : i32
    %28 = arith.extui %27 : i1 to i32
    %c0_i32_10 = arith.constant 0 : i32
    %29 = arith.cmpi ne, %28, %c0_i32_10 : i32
    scf.if %29 {
      %cst_16 = arith.constant -1.000000e+30 : f32
      %40 = vector.broadcast %cst_16 : f32 to vector<4x8x1xf32>
      %c0_17 = arith.constant 0 : index
      %c0_18 = arith.constant 0 : index
      %c0_19 = arith.constant 0 : index
      %41 = vector.load %arg14[%c0_17, %c0_18, %c0_19] : memref<4x8x1xf32, #tpu.memory_space<vmem>>, vector<4x8x1xf32>
      tpu.vector_store %arg14[%c0_17, %c0_18, %c0_19], %40 {strides = array<i32>} : memref<4x8x1xf32, #tpu.memory_space<vmem>>, vector<4x8x1xf32>,
      %cst_20 = arith.constant 0.000000e+00 : f32
      %42 = vector.broadcast %cst_20 : f32 to vector<4x8x1xf32>
      %c0_21 = arith.constant 0 : index
      %c0_22 = arith.constant 0 : index
      %c0_23 = arith.constant 0 : index
      %43 = vector.load %arg15[%c0_21, %c0_22, %c0_23] : memref<4x8x1xf32, #tpu.memory_space<vmem>>, vector<4x8x1xf32>
      tpu.vector_store %arg15[%c0_21, %c0_22, %c0_23], %42 {strides = array<i32>} : memref<4x8x1xf32, #tpu.memory_space<vmem>>, vector<4x8x1xf32>,
      %cst_24 = arith.constant 0.000000e+00 : f32
      %44 = vector.broadcast %cst_24 : f32 to vector<4x8x8xf32>
      %c0_25 = arith.constant 0 : index
      %c0_26 = arith.constant 0 : index
      %c0_27 = arith.constant 0 : index
      %45 = vector.load %arg16[%c0_25, %c0_26, %c0_27] : memref<4x8x8xf32, #tpu.memory_space<vmem>>, vector<4x8x8xf32>
      tpu.vector_store %arg16[%c0_25, %c0_26, %c0_27], %44 {strides = array<i32>} : memref<4x8x8xf32, #tpu.memory_space<vmem>>, vector<4x8x8xf32>,
      %c0_28 = arith.constant 0 : index
      %c0_29 = arith.constant 0 : index
      %46 = vector.load %arg4[%c0_28, %c0_29] : memref<32x32xbf16, #tpu.memory_space<vmem>>, vector<32x32xbf16>
      %cst_30 = arith.constant dense<0.000000e+00> : vector<8x32xf32>
      %47 = tpu.matmul %26, %46, %cst_30 {dimension_numbers = #tpu.dot_dimension_numbers<[1], [0], [0], [1], [0, 0, 1, 1], [], []>} : vector<8x32xbf16>, vector<32x32xbf16>, vector<8x32xf32> -> vector<8x32xf32>
      %c0_31 = arith.constant 0 : index
      %c0_32 = arith.constant 0 : index
      %48 = vector.load %arg6[%c0_31, %c0_32] : memref<1x32xf32, #tpu.memory_space<vmem>>, vector<1x32xf32>
      %49 = vector.broadcast %48 : vector<1x32xf32> to vector<8x32xf32>
      %50 = arith.addf %47, %49 : vector<8x32xf32>
      %51 = arith.truncf %50 : vector<8x32xf32> to vector<8x32xbf16>
      %52 = vector.extract_strided_slice %51 {offsets = [0, 0], sizes = [8, 8], strides = [1, 1]} : vector<8x32xbf16> to vector<8x8xbf16>
      %53 = vector.extract_strided_slice %51 {offsets = [0, 8], sizes = [8, 8], strides = [1, 1]} : vector<8x32xbf16> to vector<8x8xbf16>
      %54 = vector.extract_strided_slice %51 {offsets = [0, 16], sizes = [8, 8], strides = [1, 1]} : vector<8x32xbf16> to vector<8x8xbf16>
      %55 = vector.extract_strided_slice %51 {offsets = [0, 24], sizes = [8, 8], strides = [1, 1]} : vector<8x32xbf16> to vector<8x8xbf16>
      %56 = vector.shape_cast %52 : vector<8x8xbf16> to vector<1x8x8xbf16>
      %57 = vector.shape_cast %53 : vector<8x8xbf16> to vector<1x8x8xbf16>
      %58 = vector.shape_cast %54 : vector<8x8xbf16> to vector<1x8x8xbf16>
      %59 = vector.shape_cast %55 : vector<8x8xbf16> to vector<1x8x8xbf16>
      %60 = tpu.concatenate %56, %57, %58, %59 in 0 : vector<1x8x8xbf16>, vector<1x8x8xbf16>, vector<1x8x8xbf16>, vector<1x8x8xbf16> -> vector<4x8x8xbf16>
      %c0_33 = arith.constant 0 : index
      %c0_34 = arith.constant 0 : index
      %c0_35 = arith.constant 0 : index
      %61 = vector.load %arg13[%c0_33, %c0_34, %c0_35] : memref<4x8x8xbf16, #tpu.memory_space<vmem>>, vector<4x8x8xbf16>
      tpu.vector_store %arg13[%c0_33, %c0_34, %c0_35], %60 {strides = array<i32>} : memref<4x8x8xbf16, #tpu.memory_space<vmem>>, vector<4x8x8xbf16>,
    } else {
    }
    %c8_i32 = arith.constant 8 : i32
    %30 = arith.muli %arg1, %c8_i32 : i32
    %c8_i32_11 = arith.constant 8 : i32
    %31 = arith.muli %arg2, %c8_i32_11 : i32
    %c8_i32_12 = arith.constant 8 : i32
    %32 = arith.addi %30, %c8_i32_12 : i32
    %c1_i32 = arith.constant 1 : i32
    %33 = arith.subi %32, %c1_i32 : i32
    %34 = arith.cmpi sle, %31, %33 : i32
    %35 = arith.extui %34 : i1 to i32
    %c0_i32_13 = arith.constant 0 : i32
    %36 = arith.cmpi ne, %35, %c0_i32_13 : i32
    scf.if %36 {
      %c0_16 = arith.constant 0 : index
      %c0_17 = arith.constant 0 : index
      %40 = vector.load %arg5[%c0_16, %c0_17] : memref<32x64xbf16, #tpu.memory_space<vmem>>, vector<32x64xbf16>
      %cst_18 = arith.constant dense<0.000000e+00> : vector<8x64xf32>
      %41 = tpu.matmul %26, %40, %cst_18 {dimension_numbers = #tpu.dot_dimension_numbers<[1], [0], [0], [1], [0, 0, 1, 1], [], []>} : vector<8x32xbf16>, vector<32x64xbf16>, vector<8x64xf32> -> vector<8x64xf32>
      %c0_19 = arith.constant 0 : index
      %c0_20 = arith.constant 0 : index
      %42 = vector.load %arg7[%c0_19, %c0_20] : memref<1x64xf32, #tpu.memory_space<vmem>>, vector<1x64xf32>
      %43 = vector.broadcast %42 : vector<1x64xf32> to vector<8x64xf32>
      %44 = arith.addf %41, %43 : vector<8x64xf32>
      %45 = arith.truncf %44 : vector<8x64xf32> to vector<8x64xbf16>
      %46 = vector.extract_strided_slice %45 {offsets = [0, 0], sizes = [8, 8], strides = [1, 1]} : vector<8x64xbf16> to vector<8x8xbf16>
      %47 = vector.extract_strided_slice %45 {offsets = [0, 8], sizes = [8, 8], strides = [1, 1]} : vector<8x64xbf16> to vector<8x8xbf16>
      %48 = vector.extract_strided_slice %45 {offsets = [0, 16], sizes = [8, 8], strides = [1, 1]} : vector<8x64xbf16> to vector<8x8xbf16>
      %49 = vector.extract_strided_slice %45 {offsets = [0, 24], sizes = [8, 8], strides = [1, 1]} : vector<8x64xbf16> to vector<8x8xbf16>
      %50 = vector.shape_cast %46 : vector<8x8xbf16> to vector<1x8x8xbf16>
      %51 = vector.shape_cast %47 : vector<8x8xbf16> to vector<1x8x8xbf16>
      %52 = vector.shape_cast %48 : vector<8x8xbf16> to vector<1x8x8xbf16>
      %53 = vector.shape_cast %49 : vector<8x8xbf16> to vector<1x8x8xbf16>
      %54 = tpu.concatenate %50, %51, %52, %53 in 0 : vector<1x8x8xbf16>, vector<1x8x8xbf16>, vector<1x8x8xbf16>, vector<1x8x8xbf16> -> vector<4x8x8xbf16>
      %55 = vector.extract_strided_slice %45 {offsets = [0, 32], sizes = [8, 8], strides = [1, 1]} : vector<8x64xbf16> to vector<8x8xbf16>
      %56 = vector.extract_strided_slice %45 {offsets = [0, 40], sizes = [8, 8], strides = [1, 1]} : vector<8x64xbf16> to vector<8x8xbf16>
      %57 = vector.extract_strided_slice %45 {offsets = [0, 48], sizes = [8, 8], strides = [1, 1]} : vector<8x64xbf16> to vector<8x8xbf16>
      %58 = vector.extract_strided_slice %45 {offsets = [0, 56], sizes = [8, 8], strides = [1, 1]} : vector<8x64xbf16> to vector<8x8xbf16>
      %59 = vector.shape_cast %55 : vector<8x8xbf16> to vector<1x8x8xbf16>
      %60 = vector.shape_cast %56 : vector<8x8xbf16> to vector<1x8x8xbf16>
      %61 = vector.shape_cast %57 : vector<8x8xbf16> to vector<1x8x8xbf16>
      %62 = vector.shape_cast %58 : vector<8x8xbf16> to vector<1x8x8xbf16>
      %63 = tpu.concatenate %59, %60, %61, %62 in 0 : vector<1x8x8xbf16>, vector<1x8x8xbf16>, vector<1x8x8xbf16>, vector<1x8x8xbf16> -> vector<4x8x8xbf16>
      %c0_21 = arith.constant 0 : index
      %c0_22 = arith.constant 0 : index
      %c0_23 = arith.constant 0 : index
      %64 = vector.load %arg13[%c0_21, %c0_22, %c0_23] : memref<4x8x8xbf16, #tpu.memory_space<vmem>>, vector<4x8x8xbf16>
      "tpu.trace_start"() <{level = 10 : i32, message = "hqd,hkd->hqk"}> : () -> ()
      %cst_24 = arith.constant dense<0.000000e+00> : vector<4x8x8xf32>
      %65 = tpu.matmul %64, %54, %cst_24 {dimension_numbers = #tpu.dot_dimension_numbers<[2], [2], [1], [1], [0, 0, 0, 1, 1, 1], [0], [0]>} : vector<4x8x8xbf16>, vector<4x8x8xbf16>, vector<4x8x8xf32> -> vector<4x8x8xf32>
      "tpu.trace_stop"() : () -> ()
      %66 = tpu.iota {dimensions = array<i32: 0>} : vector<8x8xi32>
      %67 = vector.broadcast %30 : i32 to vector<8x8xi32>
      %68 = arith.addi %67, %66 : vector<8x8xi32>
      %69 = tpu.iota {dimensions = array<i32: 1>} : vector<8x8xi32>
      %70 = vector.broadcast %31 : i32 to vector<8x8xi32>
      %71 = arith.addi %70, %69 : vector<8x8xi32>
      %72 = arith.cmpi sge, %68, %71 : vector<8x8xi32>
      %73 = vector.shape_cast %72 : vector<8x8xi1> to vector<1x8x8xi1>
      %cst_25 = arith.constant -1.000000e+30 : f32
      %74 = vector.shape_cast %73 : vector<1x8x8xi1> to vector<1x8x8xi1>
      %75 = vector.broadcast %74 : vector<1x8x8xi1> to vector<4x8x8xi1>
      %76 = vector.broadcast %cst_25 : f32 to vector<4x8x8xf32>
      %77 = arith.select %75, %65, %76 : vector<4x8x8xi1>, vector<4x8x8xf32>
      %c0_26 = arith.constant 0 : index
      %c0_27 = arith.constant 0 : index
      %c0_28 = arith.constant 0 : index
      %78 = vector.load %arg14[%c0_26, %c0_27, %c0_28] : memref<4x8x1xf32, #tpu.memory_space<vmem>>, vector<4x8x1xf32>
      %cst_29 = arith.constant dense<0xFF800000> : vector<4x8xf32>
      %79 = vector.multi_reduction <maximumf>, %77, %cst_29 [2] : vector<4x8x8xf32> to vector<4x8xf32>
      %80 = vector.shape_cast %79 : vector<4x8xf32> to vector<4x8x1xf32>
      %81 = arith.maximumf %78, %80 : vector<4x8x1xf32>
      %82 = arith.subf %78, %81 : vector<4x8x1xf32>
      %83 = math.exp %82 : vector<4x8x1xf32>
      %84 = vector.broadcast %81 : vector<4x8x1xf32> to vector<4x8x8xf32>
      %85 = arith.subf %77, %84 : vector<4x8x8xf32>
      %86 = math.exp %85 : vector<4x8x8xf32>
      %c0_30 = arith.constant 0 : index
      %c0_31 = arith.constant 0 : index
      %c0_32 = arith.constant 0 : index
      %87 = vector.load %arg15[%c0_30, %c0_31, %c0_32] : memref<4x8x1xf32, #tpu.memory_space<vmem>>, vector<4x8x1xf32>
      %88 = arith.mulf %83, %87 : vector<4x8x1xf32>
      %cst_33 = arith.constant dense<0.000000e+00> : vector<4x8xf32>
      %89 = vector.multi_reduction <add>, %86, %cst_33 [2] : vector<4x8x8xf32> to vector<4x8xf32>
      %90 = vector.shape_cast %89 : vector<4x8xf32> to vector<4x8x1xf32>
      %91 = arith.addf %88, %90 : vector<4x8x1xf32>
      %c0_34 = arith.constant 0 : index
      %c0_35 = arith.constant 0 : index
      %c0_36 = arith.constant 0 : index
      %92 = vector.load %arg15[%c0_34, %c0_35, %c0_36] : memref<4x8x1xf32, #tpu.memory_space<vmem>>, vector<4x8x1xf32>
      tpu.vector_store %arg15[%c0_34, %c0_35, %c0_36], %91 {strides = array<i32>} : memref<4x8x1xf32, #tpu.memory_space<vmem>>, vector<4x8x1xf32>,
      %c0_37 = arith.constant 0 : index
      %c0_38 = arith.constant 0 : index
      %c0_39 = arith.constant 0 : index
      %93 = vector.load %arg16[%c0_37, %c0_38, %c0_39] : memref<4x8x8xf32, #tpu.memory_space<vmem>>, vector<4x8x8xf32>
      %94 = vector.broadcast %83 : vector<4x8x1xf32> to vector<4x8x8xf32>
      %95 = arith.mulf %94, %93 : vector<4x8x8xf32>
      %96 = arith.truncf %86 : vector<4x8x8xf32> to vector<4x8x8xbf16>
      "tpu.trace_start"() <{level = 10 : i32, message = "hqk,hkd->hqd"}> : () -> ()
      %cst_40 = arith.constant dense<0.000000e+00> : vector<4x8x8xf32>
      %97 = tpu.matmul %96, %63, %cst_40 {dimension_numbers = #tpu.dot_dimension_numbers<[2], [1], [1], [2], [0, 0, 0, 1, 1, 2], [0], [0]>} : vector<4x8x8xbf16>, vector<4x8x8xbf16>, vector<4x8x8xf32> -> vector<4x8x8xf32>
      "tpu.trace_stop"() : () -> ()
      %98 = arith.addf %95, %97 : vector<4x8x8xf32>
      %c0_41 = arith.constant 0 : index
      %c0_42 = arith.constant 0 : index
      %c0_43 = arith.constant 0 : index
      %99 = vector.load %arg16[%c0_41, %c0_42, %c0_43] : memref<4x8x8xf32, #tpu.memory_space<vmem>>, vector<4x8x8xf32>
      tpu.vector_store %arg16[%c0_41, %c0_42, %c0_43], %98 {strides = array<i32>} : memref<4x8x8xf32, #tpu.memory_space<vmem>>, vector<4x8x8xf32>,
      %c0_44 = arith.constant 0 : index
      %c0_45 = arith.constant 0 : index
      %c0_46 = arith.constant 0 : index
      %100 = vector.load %arg14[%c0_44, %c0_45, %c0_46] : memref<4x8x1xf32, #tpu.memory_space<vmem>>, vector<4x8x1xf32>
      tpu.vector_store %arg14[%c0_44, %c0_45, %c0_46], %81 {strides = array<i32>} : memref<4x8x1xf32, #tpu.memory_space<vmem>>, vector<4x8x1xf32>,
    } else {
    }
    %c0_i32_14 = arith.constant 0 : i32
    %37 = arith.cmpi eq, %arg2, %c0_i32_14 : i32
    %38 = arith.extui %37 : i1 to i32
    %c0_i32_15 = arith.constant 0 : i32
    %39 = arith.cmpi ne, %38, %c0_i32_15 : i32
    scf.if %39 {
      %c0_16 = arith.constant 0 : index
      %c0_17 = arith.constant 0 : index
      %c0_18 = arith.constant 0 : index
      %40 = vector.load %arg16[%c0_16, %c0_17, %c0_18] : memref<4x8x8xf32, #tpu.memory_space<vmem>>, vector<4x8x8xf32>
      %c0_19 = arith.constant 0 : index
      %c0_20 = arith.constant 0 : index
      %c0_21 = arith.constant 0 : index
      %41 = vector.load %arg15[%c0_19, %c0_20, %c0_21] : memref<4x8x1xf32, #tpu.memory_space<vmem>>, vector<4x8x1xf32>
      %42 = tpu.reciprocal %41 {approx = true} : vector<4x8x1xf32> -> vector<4x8x1xf32>
      %43 = vector.broadcast %42 : vector<4x8x1xf32> to vector<4x8x8xf32>
      %44 = arith.mulf %40, %43 : vector<4x8x8xf32>
      %45 = vector.extract_strided_slice %44 {offsets = [0, 0, 0], sizes = [1, 8, 8], strides = [1, 1, 1]} : vector<4x8x8xf32> to vector<1x8x8xf32>
      %46 = vector.shape_cast %45 : vector<1x8x8xf32> to vector<8x8xf32>
      %47 = arith.truncf %46 : vector<8x8xf32> to vector<8x8xbf16>
      %48 = vector.extract_strided_slice %44 {offsets = [1, 0, 0], sizes = [1, 8, 8], strides = [1, 1, 1]} : vector<4x8x8xf32> to vector<1x8x8xf32>
      %49 = vector.shape_cast %48 : vector<1x8x8xf32> to vector<8x8xf32>
      %50 = arith.truncf %49 : vector<8x8xf32> to vector<8x8xbf16>
      %51 = vector.extract_strided_slice %44 {offsets = [2, 0, 0], sizes = [1, 8, 8], strides = [1, 1, 1]} : vector<4x8x8xf32> to vector<1x8x8xf32>
      %52 = vector.shape_cast %51 : vector<1x8x8xf32> to vector<8x8xf32>
      %53 = arith.truncf %52 : vector<8x8xf32> to vector<8x8xbf16>
      %54 = vector.extract_strided_slice %44 {offsets = [3, 0, 0], sizes = [1, 8, 8], strides = [1, 1, 1]} : vector<4x8x8xf32> to vector<1x8x8xf32>
      %55 = vector.shape_cast %54 : vector<1x8x8xf32> to vector<8x8xf32>
      %56 = arith.truncf %55 : vector<8x8xf32> to vector<8x8xbf16>
      %57 = tpu.concatenate %47, %50, %53, %56 in 1 : vector<8x8xbf16>, vector<8x8xbf16>, vector<8x8xbf16>, vector<8x8xbf16> -> vector<8x32xbf16>
      %c0_22 = arith.constant 0 : index
      %c0_23 = arith.constant 0 : index
      %58 = vector.load %arg8[%c0_22, %c0_23] : memref<32x32xbf16, #tpu.memory_space<vmem>>, vector<32x32xbf16>
      %cst_24 = arith.constant dense<0.000000e+00> : vector<8x32xf32>
      %59 = tpu.matmul %57, %58, %cst_24 {dimension_numbers = #tpu.dot_dimension_numbers<[1], [0], [0], [1], [0, 0, 1, 1], [], []>} : vector<8x32xbf16>, vector<32x32xbf16>, vector<8x32xf32> -> vector<8x32xf32>
      %c0_25 = arith.constant 0 : index
      %c0_26 = arith.constant 0 : index
      %60 = vector.load %arg9[%c0_25, %c0_26] : memref<1x32xf32, #tpu.memory_space<vmem>>, vector<1x32xf32>
      %61 = vector.broadcast %60 : vector<1x32xf32> to vector<8x32xf32>
      %62 = arith.addf %59, %61 : vector<8x32xf32>
      %c0_27 = arith.constant 0 : index
      %c0_28 = arith.constant 0 : index
      %c0_29 = arith.constant 0 : index
      %63 = vector.load %arg3[%c0_27, %c0_28, %c0_29] : memref<1x8x32xf32, #tpu.memory_space<vmem>>, vector<1x8x32xf32>
      %64 = vector.shape_cast %63 : vector<1x8x32xf32> to vector<8x32xf32>
      %65 = arith.addf %62, %64 : vector<8x32xf32>
      %c0_30 = arith.constant 0 : index
      %c0_31 = arith.constant 0 : index
      %c0_32 = arith.constant 0 : index
      %66 = vector.load %arg12[%c0_30, %c0_31, %c0_32] : memref<1x8x32xf32, #tpu.memory_space<vmem>>, vector<1x8x32xf32>
      %67 = vector.shape_cast %66 : vector<1x8x32xf32> to vector<8x32xf32>
      %68 = vector.shape_cast %65 : vector<8x32xf32> to vector<1x8x32xf32>
      tpu.vector_store %arg12[%c0_30, %c0_31, %c0_32], %68 {strides = array<i32>} : memref<1x8x32xf32, #tpu.memory_space<vmem>>, vector<1x8x32xf32>,
    } else {
    }
    return
  }
  func.func @transform_0(%arg0: i32, %arg1: i32, %arg2: i32) -> (i32, i32, i32) {
    %c0_i32 = arith.constant 0 : i32
    %c0_i32_0 = arith.constant 0 : i32
    return %arg0, %arg1, %c0_i32 : i32, i32, i32
  }
  func.func @transform_1(%arg0: i32, %arg1: i32, %arg2: i32) -> (i32, i32) {
    %c0_i32 = arith.constant 0 : i32
    %c0_i32_0 = arith.constant 0 : i32
    %c0_i32_1 = arith.constant 0 : i32
    return %c0_i32, %c0_i32_0 : i32, i32
  }
  func.func @transform_2(%arg0: i32, %arg1: i32, %arg2: i32) -> (i32, i32) {
    %c0_i32 = arith.constant 0 : i32
    %c0_i32_0 = arith.constant 0 : i32
    %c0_i32_1 = arith.constant 0 : i32
    return %c0_i32, %c0_i32_0 : i32, i32
  }
  func.func @transform_3(%arg0: i32, %arg1: i32, %arg2: i32) -> (i32, i32) {
    %c0_i32 = arith.constant 0 : i32
    %c0_i32_0 = arith.constant 0 : i32
    %c0_i32_1 = arith.constant 0 : i32
    return %c0_i32, %c0_i32_0 : i32, i32
  }
  func.func @transform_4(%arg0: i32, %arg1: i32, %arg2: i32) -> (i32, i32) {
    %c0_i32 = arith.constant 0 : i32
    %c0_i32_0 = arith.constant 0 : i32
    %c0_i32_1 = arith.constant 0 : i32
    return %c0_i32, %c0_i32_0 : i32, i32
  }
  func.func @transform_5(%arg0: i32, %arg1: i32, %arg2: i32) -> (i32, i32) {
    %c0_i32 = arith.constant 0 : i32
    %c0_i32_0 = arith.constant 0 : i32
    %c0_i32_1 = arith.constant 0 : i32
    return %c0_i32, %c0_i32_0 : i32, i32
  }
  func.func @transform_6(%arg0: i32, %arg1: i32, %arg2: i32) -> (i32, i32) {
    %c0_i32 = arith.constant 0 : i32
    %c0_i32_0 = arith.constant 0 : i32
    %c0_i32_1 = arith.constant 0 : i32
    return %c0_i32, %c0_i32_0 : i32, i32
  }
  func.func @transform_7(%arg0: i32, %arg1: i32, %arg2: i32) -> (i32, i32) {
    %c0_i32 = arith.constant 0 : i32
    %c0_i32_0 = arith.constant 0 : i32
    %c0_i32_1 = arith.constant 0 : i32
    return %c0_i32, %c0_i32_0 : i32, i32
  }
  func.func @transform_8(%arg0: i32, %arg1: i32, %arg2: i32) -> (i32, i32) {
    %c0_i32 = arith.constant 0 : i32
    %c0_i32_0 = arith.constant 0 : i32
    %c0_i32_1 = arith.constant 0 : i32
    return %c0_i32, %c0_i32_0 : i32, i32
  }
  func.func @transform_9(%arg0: i32, %arg1: i32, %arg2: i32) -> (i32, i32, i32) {
    %c0_i32 = arith.constant 0 : i32
    %c0_i32_0 = arith.constant 0 : i32
    return %arg0, %arg1, %c0_i32 : i32, i32, i32
  }
}

module attributes {stable_mosaic.version = 11 : i64} {
  func.func @_res_mha_kernel(%arg0: i32, %arg1: i32, %arg2: i32, %arg3: memref<1x8x32xf32, #tpu.memory_space<vmem>>, %arg4: memref<32x32xbf16, #tpu.memory_space<vmem>>, %arg5: memref<32x64xbf16, #tpu.memory_space<vmem>>, %arg6: memref<1x32xf32, #tpu.memory_space<vmem>>, %arg7: memref<1x64xf32, #tpu.memory_space<vmem>>, %arg8: memref<32x32xbf16, #tpu.memory_space<vmem>>, %arg9: memref<1x32xf32, #tpu.memory_space<vmem>>, %arg10: memref<1x32xf32, #tpu.memory_space<vmem>>, %arg11: memref<1x32xf32, #tpu.memory_space<vmem>>, %arg12: memref<1x8x32xf32, #tpu.memory_space<vmem>>, %arg13: memref<4x8x8xbf16, #tpu.memory_space<vmem>>, %arg14: memref<4x8x1xf32, #tpu.memory_space<vmem>>, %arg15: memref<4x8x1xf32, #tpu.memory_space<vmem>>, %arg16: memref<4x8x8xf32, #tpu.memory_space<vmem>>) attributes {dimension_semantics = [#tpu.dimension_semantics<parallel>, #tpu.dimension_semantics<parallel>, #tpu.dimension_semantics<arbitrary>], iteration_bounds = array<i64: 2, 1, 1>, scalar_prefetch = 0 : i64, scratch_operands = 4 : i64, tpu.core_type = #tpu.core_type<tc>, window_params = [{transform_indices = @transform_0, window_bounds = array<i64: 1, 8, 32>}, {pipeline_mode = #tpu.pipeline_mode<synchronous>, transform_indices = @transform_1, window_bounds = array<i64: 32, 32>}, {pipeline_mode = #tpu.pipeline_mode<synchronous>, transform_indices = @transform_2, window_bounds = array<i64: 32, 64>}, {pipeline_mode = #tpu.pipeline_mode<synchronous>, transform_indices = @transform_3, window_bounds = array<i64: 1, 32>}, {pipeline_mode = #tpu.pipeline_mode<synchronous>, transform_indices = @transform_4, window_bounds = array<i64: 1, 64>}, {pipeline_mode = #tpu.pipeline_mode<synchronous>, transform_indices = @transform_5, window_bounds = array<i64: 32, 32>}, {pipeline_mode = #tpu.pipeline_mode<synchronous>, transform_indices = @transform_6, window_bounds = array<i64: 1, 32>}, {pipeline_mode = #tpu.pipeline_mode<synchronous>, transform_indices = @transform_7, window_bounds = array<i64: 1, 32>}, {pipeline_mode = #tpu.pipeline_mode<synchronous>, transform_indices = @transform_8, window_bounds = array<i64: 1, 32>}, {transform_indices = @transform_9, window_bounds = array<i64: 1, 8, 32>}]} {
    %c0 = arith.constant 0 : index
    %c0_0 = arith.constant 0 : index
    %0 = vector.load %arg10[%c0, %c0_0] : memref<1x32xf32, #tpu.memory_space<vmem>>, vector<1x32xf32>
    %c0_1 = arith.constant 0 : index
    %c0_2 = arith.constant 0 : index
    %1 = vector.load %arg11[%c0_1, %c0_2] : memref<1x32xf32, #tpu.memory_space<vmem>>, vector<1x32xf32>
    %c0_3 = arith.constant 0 : index
    %c0_4 = arith.constant 0 : index
    %c0_5 = arith.constant 0 : index
    %2 = vector.load %arg3[%c0_3, %c0_4, %c0_5] : memref<1x8x32xf32, #tpu.memory_space<vmem>>, vector<1x8x32xf32>
    %3 = vector.shape_cast %2 : vector<1x8x32xf32> to vector<8x32xf32>
    %cst = arith.constant dense<0.000000e+00> : vector<8xf32>
    %4 = vector.multi_reduction <add>, %3, %cst [1] : vector<8x32xf32> to vector<8xf32>
    %5 = vector.shape_cast %4 : vector<8xf32> to vector<8x1xf32>
    %cst_6 = arith.constant 3.200000e+01 : f32
    %6 = vector.broadcast %cst_6 : f32 to vector<8x1xf32>
    %7 = arith.divf %5, %6 : vector<8x1xf32>
    %8 = vector.broadcast %7 : vector<8x1xf32> to vector<8x32xf32>
    %9 = arith.subf %3, %8 : vector<8x32xf32>
    %10 = arith.mulf %9, %9 : vector<8x32xf32>
    %cst_7 = arith.constant dense<0.000000e+00> : vector<8xf32>
    %11 = vector.multi_reduction <add>, %10, %cst_7 [1] : vector<8x32xf32> to vector<8xf32>
    %12 = vector.shape_cast %11 : vector<8xf32> to vector<8x1xf32>
    %cst_8 = arith.constant 3.200000e+01 : f32
    %13 = vector.broadcast %cst_8 : f32 to vector<8x1xf32>
    %14 = arith.divf %12, %13 : vector<8x1xf32>
    %15 = vector.broadcast %7 : vector<8x1xf32> to vector<8x32xf32>
    %16 = arith.subf %3, %15 : vector<8x32xf32>
    %cst_9 = arith.constant 9.99999974E-6 : f32
    %17 = vector.broadcast %cst_9 : f32 to vector<8x1xf32>
    %18 = arith.addf %14, %17 : vector<8x1xf32>
    %19 = math.rsqrt %18 : vector<8x1xf32>
    %20 = vector.broadcast %19 : vector<8x1xf32> to vector<8x32xf32>
    %21 = arith.mulf %16, %20 : vector<8x32xf32>
    %22 = vector.broadcast %0 : vector<1x32xf32> to vector<8x32xf32>
    %23 = arith.mulf %21, %22 : vector<8x32xf32>
    %24 = vector.broadcast %1 : vector<1x32xf32> to vector<8x32xf32>
    %25 = arith.addf %23, %24 : vector<8x32xf32>
    %26 = arith.truncf %25 : vector<8x32xf32> to vector<8x32xbf16>
    %c0_i32 = arith.constant 0 : i32
    %27 = arith.cmpi eq, %arg2, %c0_i32 : i32
    %28 = arith.extui %27 : i1 to i32
    %c0_i32_10 = arith.constant 0 : i32
    %29 = arith.cmpi ne, %28, %c0_i32_10 : i32
    scf.if %29 {
      %cst_16 = arith.constant -1.000000e+30 : f32
      %40 = vector.broadcast %cst_16 : f32 to vector<4x8x1xf32>
      %c0_17 = arith.constant 0 : index
      %c0_18 = arith.constant 0 : index
      %c0_19 = arith.constant 0 : index
      %41 = vector.load %arg14[%c0_17, %c0_18, %c0_19] : memref<4x8x1xf32, #tpu.memory_space<vmem>>, vector<4x8x1xf32>
      tpu.vector_store %arg14[%c0_17, %c0_18, %c0_19], %40 {strides = array<i32>} : memref<4x8x1xf32, #tpu.memory_space<vmem>>, vector<4x8x1xf32>,
      %cst_20 = arith.constant 0.000000e+00 : f32
      %42 = vector.broadcast %cst_20 : f32 to vector<4x8x1xf32>
      %c0_21 = arith.constant 0 : index
      %c0_22 = arith.constant 0 : index
      %c0_23 = arith.constant 0 : index
      %43 = vector.load %arg15[%c0_21, %c0_22, %c0_23] : memref<4x8x1xf32, #tpu.memory_space<vmem>>, vector<4x8x1xf32>
      tpu.vector_store %arg15[%c0_21, %c0_22, %c0_23], %42 {strides = array<i32>} : memref<4x8x1xf32, #tpu.memory_space<vmem>>, vector<4x8x1xf32>,
      %cst_24 = arith.constant 0.000000e+00 : f32
      %44 = vector.broadcast %cst_24 : f32 to vector<4x8x8xf32>
      %c0_25 = arith.constant 0 : index
      %c0_26 = arith.constant 0 : index
      %c0_27 = arith.constant 0 : index
      %45 = vector.load %arg16[%c0_25, %c0_26, %c0_27] : memref<4x8x8xf32, #tpu.memory_space<vmem>>, vector<4x8x8xf32>
      tpu.vector_store %arg16[%c0_25, %c0_26, %c0_27], %44 {strides = array<i32>} : memref<4x8x8xf32, #tpu.memory_space<vmem>>, vector<4x8x8xf32>,
      %c0_28 = arith.constant 0 : index
      %c0_29 = arith.constant 0 : index
      %46 = vector.load %arg4[%c0_28, %c0_29] : memref<32x32xbf16, #tpu.memory_space<vmem>>, vector<32x32xbf16>
      %cst_30 = arith.constant dense<0.000000e+00> : vector<8x32xf32>
      %47 = tpu.matmul %26, %46, %cst_30 {dimension_numbers = #tpu.dot_dimension_numbers<[1], [0], [0], [1], [0, 0, 1, 1], [], []>} : vector<8x32xbf16>, vector<32x32xbf16>, vector<8x32xf32> -> vector<8x32xf32>
      %c0_31 = arith.constant 0 : index
      %c0_32 = arith.constant 0 : index
      %48 = vector.load %arg6[%c0_31, %c0_32] : memref<1x32xf32, #tpu.memory_space<vmem>>, vector<1x32xf32>
      %49 = vector.broadcast %48 : vector<1x32xf32> to vector<8x32xf32>
      %50 = arith.addf %47, %49 : vector<8x32xf32>
      %51 = arith.truncf %50 : vector<8x32xf32> to vector<8x32xbf16>
      %52 = vector.extract_strided_slice %51 {offsets = [0, 0], sizes = [8, 8], strides = [1, 1]} : vector<8x32xbf16> to vector<8x8xbf16>
      %53 = vector.extract_strided_slice %51 {offsets = [0, 8], sizes = [8, 8], strides = [1, 1]} : vector<8x32xbf16> to vector<8x8xbf16>
      %54 = vector.extract_strided_slice %51 {offsets = [0, 16], sizes = [8, 8], strides = [1, 1]} : vector<8x32xbf16> to vector<8x8xbf16>
      %55 = vector.extract_strided_slice %51 {offsets = [0, 24], sizes = [8, 8], strides = [1, 1]} : vector<8x32xbf16> to vector<8x8xbf16>
      %56 = vector.shape_cast %52 : vector<8x8xbf16> to vector<1x8x8xbf16>
      %57 = vector.shape_cast %53 : vector<8x8xbf16> to vector<1x8x8xbf16>
      %58 = vector.shape_cast %54 : vector<8x8xbf16> to vector<1x8x8xbf16>
      %59 = vector.shape_cast %55 : vector<8x8xbf16> to vector<1x8x8xbf16>
      %60 = tpu.concatenate %56, %57, %58, %59 in 0 : vector<1x8x8xbf16>, vector<1x8x8xbf16>, vector<1x8x8xbf16>, vector<1x8x8xbf16> -> vector<4x8x8xbf16>
      %c0_33 = arith.constant 0 : index
      %c0_34 = arith.constant 0 : index
      %c0_35 = arith.constant 0 : index
      %61 = vector.load %arg13[%c0_33, %c0_34, %c0_35] : memref<4x8x8xbf16, #tpu.memory_space<vmem>>, vector<4x8x8xbf16>
      tpu.vector_store %arg13[%c0_33, %c0_34, %c0_35], %60 {strides = array<i32>} : memref<4x8x8xbf16, #tpu.memory_space<vmem>>, vector<4x8x8xbf16>,
    } else {
    }
    %c8_i32 = arith.constant 8 : i32
    %30 = arith.muli %arg1, %c8_i32 : i32
    %c8_i32_11 = arith.constant 8 : i32
    %31 = arith.muli %arg2, %c8_i32_11 : i32
    %c8_i32_12 = arith.constant 8 : i32
    %32 = arith.addi %30, %c8_i32_12 : i32
    %c1_i32 = arith.constant 1 : i32
    %33 = arith.subi %32, %c1_i32 : i32
    %34 = arith.cmpi sle, %31, %33 : i32
    %35 = arith.extui %34 : i1 to i32
    %c0_i32_13 = arith.constant 0 : i32
    %36 = arith.cmpi ne, %35, %c0_i32_13 : i32
    scf.if %36 {
      %c0_16 = arith.constant 0 : index
      %c0_17 = arith.constant 0 : index
      %40 = vector.load %arg5[%c0_16, %c0_17] : memref<32x64xbf16, #tpu.memory_space<vmem>>, vector<32x64xbf16>
      %cst_18 = arith.constant dense<0.000000e+00> : vector<8x64xf32>
      %41 = tpu.matmul %26, %40, %cst_18 {dimension_numbers = #tpu.dot_dimension_numbers<[1], [0], [0], [1], [0, 0, 1, 1], [], []>} : vector<8x32xbf16>, vector<32x64xbf16>, vector<8x64xf32> -> vector<8x64xf32>
      %c0_19 = arith.constant 0 : index
      %c0_20 = arith.constant 0 : index
      %42 = vector.load %arg7[%c0_19, %c0_20] : memref<1x64xf32, #tpu.memory_space<vmem>>, vector<1x64xf32>
      %43 = vector.broadcast %42 : vector<1x64xf32> to vector<8x64xf32>
      %44 = arith.addf %41, %43 : vector<8x64xf32>
      %45 = arith.truncf %44 : vector<8x64xf32> to vector<8x64xbf16>
      %46 = vector.extract_strided_slice %45 {offsets = [0, 0], sizes = [8, 8], strides = [1, 1]} : vector<8x64xbf16> to vector<8x8xbf16>
      %47 = vector.extract_strided_slice %45 {offsets = [0, 8], sizes = [8, 8], strides = [1, 1]} : vector<8x64xbf16> to vector<8x8xbf16>
      %48 = vector.extract_strided_slice %45 {offsets = [0, 16], sizes = [8, 8], strides = [1, 1]} : vector<8x64xbf16> to vector<8x8xbf16>
      %49 = vector.extract_strided_slice %45 {offsets = [0, 24], sizes = [8, 8], strides = [1, 1]} : vector<8x64xbf16> to vector<8x8xbf16>
      %50 = vector.shape_cast %46 : vector<8x8xbf16> to vector<1x8x8xbf16>
      %51 = vector.shape_cast %47 : vector<8x8xbf16> to vector<1x8x8xbf16>
      %52 = vector.shape_cast %48 : vector<8x8xbf16> to vector<1x8x8xbf16>
      %53 = vector.shape_cast %49 : vector<8x8xbf16> to vector<1x8x8xbf16>
      %54 = tpu.concatenate %50, %51, %52, %53 in 0 : vector<1x8x8xbf16>, vector<1x8x8xbf16>, vector<1x8x8xbf16>, vector<1x8x8xbf16> -> vector<4x8x8xbf16>
      %55 = vector.extract_strided_slice %45 {offsets = [0, 32], sizes = [8, 8], strides = [1, 1]} : vector<8x64xbf16> to vector<8x8xbf16>
      %56 = vector.extract_strided_slice %45 {offsets = [0, 40], sizes = [8, 8], strides = [1, 1]} : vector<8x64xbf16> to vector<8x8xbf16>
      %57 = vector.extract_strided_slice %45 {offsets = [0, 48], sizes = [8, 8], strides = [1, 1]} : vector<8x64xbf16> to vector<8x8xbf16>
      %58 = vector.extract_strided_slice %45 {offsets = [0, 56], sizes = [8, 8], strides = [1, 1]} : vector<8x64xbf16> to vector<8x8xbf16>
      %59 = vector.shape_cast %55 : vector<8x8xbf16> to vector<1x8x8xbf16>
      %60 = vector.shape_cast %56 : vector<8x8xbf16> to vector<1x8x8xbf16>
      %61 = vector.shape_cast %57 : vector<8x8xbf16> to vector<1x8x8xbf16>
      %62 = vector.shape_cast %58 : vector<8x8xbf16> to vector<1x8x8xbf16>
      %63 = tpu.concatenate %59, %60, %61, %62 in 0 : vector<1x8x8xbf16>, vector<1x8x8xbf16>, vector<1x8x8xbf16>, vector<1x8x8xbf16> -> vector<4x8x8xbf16>
      %c0_21 = arith.constant 0 : index
      %c0_22 = arith.constant 0 : index
      %c0_23 = arith.constant 0 : index
      %64 = vector.load %arg13[%c0_21, %c0_22, %c0_23] : memref<4x8x8xbf16, #tpu.memory_space<vmem>>, vector<4x8x8xbf16>
      "tpu.trace_start"() <{level = 10 : i32, message = "hqd,hkd->hqk"}> : () -> ()
      %cst_24 = arith.constant dense<0.000000e+00> : vector<4x8x8xf32>
      %65 = tpu.matmul %64, %54, %cst_24 {dimension_numbers = #tpu.dot_dimension_numbers<[2], [2], [1], [1], [0, 0, 0, 1, 1, 1], [0], [0]>} : vector<4x8x8xbf16>, vector<4x8x8xbf16>, vector<4x8x8xf32> -> vector<4x8x8xf32>
      "tpu.trace_stop"() : () -> ()
      %66 = tpu.iota {dimensions = array<i32: 0>} : vector<8x8xi32>
      %67 = vector.broadcast %30 : i32 to vector<8x8xi32>
      %68 = arith.addi %67, %66 : vector<8x8xi32>
      %69 = tpu.iota {dimensions = array<i32: 1>} : vector<8x8xi32>
      %70 = vector.broadcast %31 : i32 to vector<8x8xi32>
      %71 = arith.addi %70, %69 : vector<8x8xi32>
      %72 = arith.cmpi sge, %68, %71 : vector<8x8xi32>
      %73 = vector.shape_cast %72 : vector<8x8xi1> to vector<1x8x8xi1>
      %cst_25 = arith.constant -1.000000e+30 : f32
      %74 = vector.shape_cast %73 : vector<1x8x8xi1> to vector<1x8x8xi1>
      %75 = vector.broadcast %74 : vector<1x8x8xi1> to vector<4x8x8xi1>
      %76 = vector.broadcast %cst_25 : f32 to vector<4x8x8xf32>
      %77 = arith.select %75, %65, %76 : vector<4x8x8xi1>, vector<4x8x8xf32>
      %c0_26 = arith.constant 0 : index
      %c0_27 = arith.constant 0 : index
      %c0_28 = arith.constant 0 : index
      %78 = vector.load %arg14[%c0_26, %c0_27, %c0_28] : memref<4x8x1xf32, #tpu.memory_space<vmem>>, vector<4x8x1xf32>
      %cst_29 = arith.constant dense<0xFF800000> : vector<4x8xf32>
      %79 = vector.multi_reduction <maximumf>, %77, %cst_29 [2] : vector<4x8x8xf32> to vector<4x8xf32>
      %80 = vector.shape_cast %79 : vector<4x8xf32> to vector<4x8x1xf32>
      %81 = arith.maximumf %78, %80 : vector<4x8x1xf32>
      %82 = arith.subf %78, %81 : vector<4x8x1xf32>
      %83 = math.exp %82 : vector<4x8x1xf32>
      %84 = vector.broadcast %81 : vector<4x8x1xf32> to vector<4x8x8xf32>
      %85 = arith.subf %77, %84 : vector<4x8x8xf32>
      %86 = math.exp %85 : vector<4x8x8xf32>
      %c0_30 = arith.constant 0 : index
      %c0_31 = arith.constant 0 : index
      %c0_32 = arith.constant 0 : index
      %87 = vector.load %arg15[%c0_30, %c0_31, %c0_32] : memref<4x8x1xf32, #tpu.memory_space<vmem>>, vector<4x8x1xf32>
      %88 = arith.mulf %83, %87 : vector<4x8x1xf32>
      %cst_33 = arith.constant dense<0.000000e+00> : vector<4x8xf32>
      %89 = vector.multi_reduction <add>, %86, %cst_33 [2] : vector<4x8x8xf32> to vector<4x8xf32>
      %90 = vector.shape_cast %89 : vector<4x8xf32> to vector<4x8x1xf32>
      %91 = arith.addf %88, %90 : vector<4x8x1xf32>
      %c0_34 = arith.constant 0 : index
      %c0_35 = arith.constant 0 : index
      %c0_36 = arith.constant 0 : index
      %92 = vector.load %arg15[%c0_34, %c0_35, %c0_36] : memref<4x8x1xf32, #tpu.memory_space<vmem>>, vector<4x8x1xf32>
      tpu.vector_store %arg15[%c0_34, %c0_35, %c0_36], %91 {strides = array<i32>} : memref<4x8x1xf32, #tpu.memory_space<vmem>>, vector<4x8x1xf32>,
      %c0_37 = arith.constant 0 : index
      %c0_38 = arith.constant 0 : index
      %c0_39 = arith.constant 0 : index
      %93 = vector.load %arg16[%c0_37, %c0_38, %c0_39] : memref<4x8x8xf32, #tpu.memory_space<vmem>>, vector<4x8x8xf32>
      %94 = vector.broadcast %83 : vector<4x8x1xf32> to vector<4x8x8xf32>
      %95 = arith.mulf %94, %93 : vector<4x8x8xf32>
      %96 = arith.truncf %86 : vector<4x8x8xf32> to vector<4x8x8xbf16>
      "tpu.trace_start"() <{level = 10 : i32, message = "hqk,hkd->hqd"}> : () -> ()
      %cst_40 = arith.constant dense<0.000000e+00> : vector<4x8x8xf32>
      %97 = tpu.matmul %96, %63, %cst_40 {dimension_numbers = #tpu.dot_dimension_numbers<[2], [1], [1], [2], [0, 0, 0, 1, 1, 2], [0], [0]>} : vector<4x8x8xbf16>, vector<4x8x8xbf16>, vector<4x8x8xf32> -> vector<4x8x8xf32>
      "tpu.trace_stop"() : () -> ()
      %98 = arith.addf %95, %97 : vector<4x8x8xf32>
      %c0_41 = arith.constant 0 : index
      %c0_42 = arith.constant 0 : index
      %c0_43 = arith.constant 0 : index
      %99 = vector.load %arg16[%c0_41, %c0_42, %c0_43] : memref<4x8x8xf32, #tpu.memory_space<vmem>>, vector<4x8x8xf32>
      tpu.vector_store %arg16[%c0_41, %c0_42, %c0_43], %98 {strides = array<i32>} : memref<4x8x8xf32, #tpu.memory_space<vmem>>, vector<4x8x8xf32>,
      %c0_44 = arith.constant 0 : index
      %c0_45 = arith.constant 0 : index
      %c0_46 = arith.constant 0 : index
      %100 = vector.load %arg14[%c0_44, %c0_45, %c0_46] : memref<4x8x1xf32, #tpu.memory_space<vmem>>, vector<4x8x1xf32>
      tpu.vector_store %arg14[%c0_44, %c0_45, %c0_46], %81 {strides = array<i32>} : memref<4x8x1xf32, #tpu.memory_space<vmem>>, vector<4x8x1xf32>,
    } else {
    }
    %c0_i32_14 = arith.constant 0 : i32
    %37 = arith.cmpi eq, %arg2, %c0_i32_14 : i32
    %38 = arith.extui %37 : i1 to i32
    %c0_i32_15 = arith.constant 0 : i32
    %39 = arith.cmpi ne, %38, %c0_i32_15 : i32
    scf.if %39 {
      %c0_16 = arith.constant 0 : index
      %c0_17 = arith.constant 0 : index
      %c0_18 = arith.constant 0 : index
      %40 = vector.load %arg16[%c0_16, %c0_17, %c0_18] : memref<4x8x8xf32, #tpu.memory_space<vmem>>, vector<4x8x8xf32>
      %c0_19 = arith.constant 0 : index
      %c0_20 = arith.constant 0 : index
      %c0_21 = arith.constant 0 : index
      %41 = vector.load %arg15[%c0_19, %c0_20, %c0_21] : memref<4x8x1xf32, #tpu.memory_space<vmem>>, vector<4x8x1xf32>
      %42 = tpu.reciprocal %41 {approx = true} : vector<4x8x1xf32> -> vector<4x8x1xf32>
      %43 = vector.broadcast %42 : vector<4x8x1xf32> to vector<4x8x8xf32>
      %44 = arith.mulf %40, %43 : vector<4x8x8xf32>
      %45 = vector.extract_strided_slice %44 {offsets = [0, 0, 0], sizes = [1, 8, 8], strides = [1, 1, 1]} : vector<4x8x8xf32> to vector<1x8x8xf32>
      %46 = vector.shape_cast %45 : vector<1x8x8xf32> to vector<8x8xf32>
      %47 = arith.truncf %46 : vector<8x8xf32> to vector<8x8xbf16>
      %48 = vector.extract_strided_slice %44 {offsets = [1, 0, 0], sizes = [1, 8, 8], strides = [1, 1, 1]} : vector<4x8x8xf32> to vector<1x8x8xf32>
      %49 = vector.shape_cast %48 : vector<1x8x8xf32> to vector<8x8xf32>
      %50 = arith.truncf %49 : vector<8x8xf32> to vector<8x8xbf16>
      %51 = vector.extract_strided_slice %44 {offsets = [2, 0, 0], sizes = [1, 8, 8], strides = [1, 1, 1]} : vector<4x8x8xf32> to vector<1x8x8xf32>
      %52 = vector.shape_cast %51 : vector<1x8x8xf32> to vector<8x8xf32>
      %53 = arith.truncf %52 : vector<8x8xf32> to vector<8x8xbf16>
      %54 = vector.extract_strided_slice %44 {offsets = [3, 0, 0], sizes = [1, 8, 8], strides = [1, 1, 1]} : vector<4x8x8xf32> to vector<1x8x8xf32>
      %55 = vector.shape_cast %54 : vector<1x8x8xf32> to vector<8x8xf32>
      %56 = arith.truncf %55 : vector<8x8xf32> to vector<8x8xbf16>
      %57 = tpu.concatenate %47, %50, %53, %56 in 1 : vector<8x8xbf16>, vector<8x8xbf16>, vector<8x8xbf16>, vector<8x8xbf16> -> vector<8x32xbf16>
      %c0_22 = arith.constant 0 : index
      %c0_23 = arith.constant 0 : index
      %58 = vector.load %arg8[%c0_22, %c0_23] : memref<32x32xbf16, #tpu.memory_space<vmem>>, vector<32x32xbf16>
      %cst_24 = arith.constant dense<0.000000e+00> : vector<8x32xf32>
      %59 = tpu.matmul %57, %58, %cst_24 {dimension_numbers = #tpu.dot_dimension_numbers<[1], [0], [0], [1], [0, 0, 1, 1], [], []>} : vector<8x32xbf16>, vector<32x32xbf16>, vector<8x32xf32> -> vector<8x32xf32>
      %c0_25 = arith.constant 0 : index
      %c0_26 = arith.constant 0 : index
      %60 = vector.load %arg9[%c0_25, %c0_26] : memref<1x32xf32, #tpu.memory_space<vmem>>, vector<1x32xf32>
      %61 = vector.broadcast %60 : vector<1x32xf32> to vector<8x32xf32>
      %62 = arith.addf %59, %61 : vector<8x32xf32>
      %c0_27 = arith.constant 0 : index
      %c0_28 = arith.constant 0 : index
      %c0_29 = arith.constant 0 : index
      %63 = vector.load %arg3[%c0_27, %c0_28, %c0_29] : memref<1x8x32xf32, #tpu.memory_space<vmem>>, vector<1x8x32xf32>
      %64 = vector.shape_cast %63 : vector<1x8x32xf32> to vector<8x32xf32>
      %65 = arith.addf %62, %64 : vector<8x32xf32>
      %c0_30 = arith.constant 0 : index
      %c0_31 = arith.constant 0 : index
      %c0_32 = arith.constant 0 : index
      %66 = vector.load %arg12[%c0_30, %c0_31, %c0_32] : memref<1x8x32xf32, #tpu.memory_space<vmem>>, vector<1x8x32xf32>
      %67 = vector.shape_cast %66 : vector<1x8x32xf32> to vector<8x32xf32>
      %68 = vector.shape_cast %65 : vector<8x32xf32> to vector<1x8x32xf32>
      tpu.vector_store %arg12[%c0_30, %c0_31, %c0_32], %68 {strides = array<i32>} : memref<1x8x32xf32, #tpu.memory_space<vmem>>, vector<1x8x32xf32>,
    } else {
    }
    return
  }
  func.func @transform_0(%arg0: i32, %arg1: i32, %arg2: i32) -> (i32, i32, i32) {
    %c0_i32 = arith.constant 0 : i32
    %c0_i32_0 = arith.constant 0 : i32
    return %arg0, %arg1, %c0_i32 : i32, i32, i32
  }
  func.func @transform_1(%arg0: i32, %arg1: i32, %arg2: i32) -> (i32, i32) {
    %c0_i32 = arith.constant 0 : i32
    %c0_i32_0 = arith.constant 0 : i32
    %c0_i32_1 = arith.constant 0 : i32
    return %c0_i32, %c0_i32_0 : i32, i32
  }
  func.func @transform_2(%arg0: i32, %arg1: i32, %arg2: i32) -> (i32, i32) {
    %c0_i32 = arith.constant 0 : i32
    %c0_i32_0 = arith.constant 0 : i32
    %c0_i32_1 = arith.constant 0 : i32
    return %c0_i32, %c0_i32_0 : i32, i32
  }
  func.func @transform_3(%arg0: i32, %arg1: i32, %arg2: i32) -> (i32, i32) {
    %c0_i32 = arith.constant 0 : i32
    %c0_i32_0 = arith.constant 0 : i32
    %c0_i32_1 = arith.constant 0 : i32
    return %c0_i32, %c0_i32_0 : i32, i32
  }
  func.func @transform_4(%arg0: i32, %arg1: i32, %arg2: i32) -> (i32, i32) {
    %c0_i32 = arith.constant 0 : i32
    %c0_i32_0 = arith.constant 0 : i32
    %c0_i32_1 = arith.constant 0 : i32
    return %c0_i32, %c0_i32_0 : i32, i32
  }
  func.func @transform_5(%arg0: i32, %arg1: i32, %arg2: i32) -> (i32, i32) {
    %c0_i32 = arith.constant 0 : i32
    %c0_i32_0 = arith.constant 0 : i32
    %c0_i32_1 = arith.constant 0 : i32
    return %c0_i32, %c0_i32_0 : i32, i32
  }
  func.func @transform_6(%arg0: i32, %arg1: i32, %arg2: i32) -> (i32, i32) {
    %c0_i32 = arith.constant 0 : i32
    %c0_i32_0 = arith.constant 0 : i32
    %c0_i32_1 = arith.constant 0 : i32
    return %c0_i32, %c0_i32_0 : i32, i32
  }
  func.func @transform_7(%arg0: i32, %arg1: i32, %arg2: i32) -> (i32, i32) {
    %c0_i32 = arith.constant 0 : i32
    %c0_i32_0 = arith.constant 0 : i32
    %c0_i32_1 = arith.constant 0 : i32
    return %c0_i32, %c0_i32_0 : i32, i32
  }
  func.func @transform_8(%arg0: i32, %arg1: i32, %arg2: i32) -> (i32, i32) {
    %c0_i32 = arith.constant 0 : i32
    %c0_i32_0 = arith.constant 0 : i32
    %c0_i32_1 = arith.constant 0 : i32
    return %c0_i32, %c0_i32_0 : i32, i32
  }
  func.func @transform_9(%arg0: i32, %arg1: i32, %arg2: i32) -> (i32, i32, i32) {
    %c0_i32 = arith.constant 0 : i32
    %c0_i32_0 = arith.constant 0 : i32
    return %arg0, %arg1, %c0_i32 : i32, i32, i32
  }
}

</mosaic_0001>

<llo_original>
// kernel: tpu_custom_call.1
$region0: #{tpu_custom_call.1}
  #allocation0 [shape = 'u32[]', space=smem, size = 0x4, offset = 0x4, fixed_abs, tag = 'smem constant byte address 0x4 - core index']
  #allocation1 [shape = 'u32[72,128]{1,0:T(1,128)}', space=vmem, size = 0x9000, scoped, tag = 'internal scratch']
  #allocation2 [shape = 'bf16[4,8,8]{2,1,0:T(8,128)(2,1)}', space=vmem, size = 0x2000, scoped, tag = 'scratch operand']
  #allocation3 [shape = 'f32[4,8,1]{2,1,0:T(8,128)}', space=vmem, size = 0x4000, scoped, tag = 'scratch operand']
  #allocation4 [shape = 'f32[4,8,1]{2,1,0:T(8,128)}', space=vmem, size = 0x4000, scoped, tag = 'scratch operand']
  #allocation5 [shape = 'f32[4,8,8]{2,1,0:T(8,128)}', space=vmem, size = 0x4000, scoped, tag = 'scratch operand']
  %s0 = inlined_call_operand.hbm [shape: f32[2,8,32], index: 0, kind: input, shape index: {}]
  %s1 = inlined_call_operand.hbm [shape: bf16[32,32], index: 1, kind: input, shape index: {}]
  %s2 = inlined_call_operand.hbm [shape: bf16[32,64], index: 2, kind: input, shape index: {}]
  %s3 = inlined_call_operand.vmem [shape: f32[1,32], index: 3, kind: input, shape index: {}]
  %s4 = inlined_call_operand.vmem [shape: f32[1,64], index: 4, kind: input, shape index: {}]
  %s5 = inlined_call_operand.hbm [shape: bf16[32,32], index: 5, kind: input, shape index: {}]
  %s6 = inlined_call_operand.vmem [shape: f32[1,32], index: 6, kind: input, shape index: {}]
  %s7 = inlined_call_operand.vmem [shape: f32[1,32], index: 7, kind: input, shape index: {}]
  %s8 = inlined_call_operand.vmem [shape: f32[1,32], index: 8, kind: input, shape index: {}]
  %s9 = inlined_call_operand.hbm [shape: f32[2,8,32], index: 9, kind: output, shape index: {}]
  %s10 = sld [smem:[#allocation0]]
  $region97: #{tpu_custom_call.1} parent=0
    _
  %s12 = ssub.s32 1, %s10
  %s13 = scalar_select 0, %s12, %s10
  $region1: #{tpu_custom_call.1} parent=0
    #allocation6 [shape = 'u8[8192]{0}', space=vmem, size = 0x2000, scoped, tag = 'input window, operand 0']
    #allocation7 [shape = 's32[2]{0}', space=sflag, size = 0x8, scoped, tag = 'scoped memory for tpu_custom_call.1']
    #allocation8 [shape = 's32[2]{0}', space=sflag, size = 0x8, scoped, tag = 'scoped memory for tpu_custom_call.1']
    #allocation9 [shape = 'u8[8192]{0}', space=vmem, size = 0x2000, scoped, tag = 'input window, operand 1, single buffered']
    #allocation10 [shape = 's32[1]{0}', space=sflag, size = 0x4, scoped, tag = 'scoped memory for tpu_custom_call.1']
    #allocation11 [shape = 'u8[8192]{0}', space=vmem, size = 0x2000, scoped, tag = 'input window, operand 2, single buffered']
    #allocation12 [shape = 'u8[8192]{0}', space=vmem, size = 0x2000, scoped, tag = 'input window, operand 5, single buffered']
    #allocation13 [shape = 's32[1]{0}', space=sflag, size = 0x4, scoped, tag = 'scoped memory for tpu_custom_call.1']
    #allocation14 [shape = 'u8[8192]{0}', space=vmem, size = 0x2000, scoped, tag = 'output window, operand 0']
    %14 = vsyncpa [#allocation7], 0
    %s15 = scalar_lea.sflag [#allocation7], 1
    %16 = vsyncpa %s15, 0
    %17 = vsyncpa [#allocation10], 0
    %18 = vsyncpa [#allocation13], 0
    %19 = vsyncpa [#allocation8], 0
    %s20 = scalar_lea.sflag [#allocation8], 1
    %21 = vsyncpa %s20, 0
    loop: start=0, step=1, limit=4
    $region2: #{tpu_custom_call.1} parent=1 // loop_pre_header
      _
    $region3: #{tpu_custom_call.1} parent=1 // loop_header
      %s23 = sphi 0, %s27
      %p24 = scmp.ge.s32.totalorder %s23, 4
      %s30 = sphi 0, %s49
      %s31 = sphi 0, %s45
      %s32 = sphi 0, %s41
      %s33 = sphi 0, %s30
      %s34 = sphi 0, %s31
      %s35 = sphi 0, %s32
      %s36 = sphi 0, %s33
      %s37 = sphi 0, %s34
      %s38 = sphi 0, %s35
      %s54 = sphi 0, %s56
      %s57 = sphi 0, %s54
      %s58 = sphi 0, %s57
      %s74 = sphi 0, %s58
      %s78 = sphi 0, %s78
      %s80 = sphi 0, %s78
      %s81 = sphi 0, %s80
      %s95 = sphi 0, %s81
      %s99 = sphi 0, %s99
      %s101 = sphi 0, %s99
      %s102 = sphi 0, %s101
      %s116 = sphi 0, %s102
      %s120 = sphi 0, %s120
      %s122 = sphi 0, %s120
      %s123 = sphi 0, %s122
      %s137 = sphi 0, %s123
      %s141 = sphi 0, %s141
      %s143 = sphi 0, %s141
      %s144 = sphi 0, %s143
      %s158 = sphi 0, %s144
      %s162 = sphi 0, %s162
      %s164 = sphi 0, %s162
      %s165 = sphi 0, %s164
      %s179 = sphi 0, %s165
      %s183 = sphi 0, %s183
      %s185 = sphi 0, %s183
      %s186 = sphi 0, %s185
      %s200 = sphi 0, %s186
      %s204 = sphi 0, %s204
      %s206 = sphi 0, %s204
      %s207 = sphi 0, %s206
      %s221 = sphi 0, %s207
      %s225 = sphi 0, %s225
      %s227 = sphi 0, %s225
      %s228 = sphi 0, %s227
      %s242 = sphi 0, %s228
      %s250 = sphi 0, %s252
      %s253 = sphi 0, %s250
      %s254 = sphi 0, %s253
      %s270 = sphi 0, %s254
    $region4: #{tpu_custom_call.1} parent=1 // loop_header_branch
      %26 = sbr.rel (%p24) target = $region8
    $region5: #{tpu_custom_call.1} parent=1 // loop_body
      %s28 = ssub.s32 %s23, 1
      %s29 = ssub.s32 %s23, 2
      %s39 = sadd.s32 1, %s32
      %p40 = scmp.ge.s32.totalorder %s39, 1
      %s41 = scalar_select %p40, 0, %s39
      %s42 = sadd.s32 1, %s31
      %s43 = scalar_select %p40, %s42, %s31
      %p44 = scmp.ge.s32.totalorder %s43, 1
      %s45 = scalar_select %p44, 0, %s43
      %s46 = sadd.s32 1, %s30
      %s47 = scalar_select %p44, %s46, %s30
      %p48 = scmp.ge.s32.totalorder %s47, 2
      %s49 = scalar_select %p48, 0, %s47
      %s50 = ssub.s32 %s30, %s49
      %s51 = ssub.s32 %s31, %s45
      %s52 = sor.u32 %s50, %s51
      %p53 = scmp.eq.s32.totalorder %s52, 0
      %s55 = sadd.s32 %s54, 1
      %s56 = scalar_select %p53, %s54, %s55
      %p59 = pneg %p53
      %p60 = scmp.eq.s32.totalorder %s23, 1
      %p61 = por %p59, %p60
      %p62 = scmp.ne.s32.totalorder %s54, %s57
      %p63 = scmp.eq.s32.totalorder %s23, 0
      %p64 = por %p62, %p63
      %p65 = scmp.ne.s32.totalorder %s54, %s57
      %p66 = scmp.eq.s32.totalorder %s28, 1
      %p67 = por %p65, %p66
      %p68 = scmp.ne.s32.totalorder %s57, %s58
      %p69 = scmp.eq.s32.totalorder %s28, 0
      %p70 = por %p68, %p69
      %p71 = scmp.ne.s32.totalorder %s57, %s58
      %p72 = scmp.eq.s32.totalorder %s29, 1
      %p73 = por %p71, %p72
      %p75 = scmp.ne.s32.totalorder %s58, %s74
      %p76 = scmp.eq.s32.totalorder %s29, 0
      %p77 = por %p75, %p76
      %s79 = sadd.s32 %s78, 1
      %p82 = scmp.eq.s32.totalorder %s23, 1
      %p83 = scmp.ne.s32.totalorder %s78, %s80
      %p84 = scmp.eq.s32.totalorder %s23, 0
      %p85 = por %p83, %p84
      %p86 = scmp.ne.s32.totalorder %s78, %s80
      %p87 = scmp.eq.s32.totalorder %s28, 1
      %p88 = por %p86, %p87
      %p89 = scmp.ne.s32.totalorder %s80, %s81
      %p90 = scmp.eq.s32.totalorder %s28, 0
      %p91 = por %p89, %p90
      %p92 = scmp.ne.s32.totalorder %s80, %s81
      %p93 = scmp.eq.s32.totalorder %s29, 1
      %p94 = por %p92, %p93
      %p96 = scmp.ne.s32.totalorder %s81, %s95
      %p97 = scmp.eq.s32.totalorder %s29, 0
      %p98 = por %p96, %p97
      %s100 = sadd.s32 %s99, 1
      %p103 = scmp.eq.s32.totalorder %s23, 1
      %p104 = scmp.ne.s32.totalorder %s99, %s101
      %p105 = scmp.eq.s32.totalorder %s23, 0
      %p106 = por %p104, %p105
      %p107 = scmp.ne.s32.totalorder %s99, %s101
      %p108 = scmp.eq.s32.totalorder %s28, 1
      %p109 = por %p107, %p108
      %p110 = scmp.ne.s32.totalorder %s101, %s102
      %p111 = scmp.eq.s32.totalorder %s28, 0
      %p112 = por %p110, %p111
      %p113 = scmp.ne.s32.totalorder %s101, %s102
      %p114 = scmp.eq.s32.totalorder %s29, 1
      %p115 = por %p113, %p114
      %p117 = scmp.ne.s32.totalorder %s102, %s116
      %p118 = scmp.eq.s32.totalorder %s29, 0
      %p119 = por %p117, %p118
      %s121 = sadd.s32 %s120, 1
      %p124 = scmp.eq.s32.totalorder %s23, 1
      %p125 = scmp.ne.s32.totalorder %s120, %s122
      %p126 = scmp.eq.s32.totalorder %s23, 0
      %p127 = por %p125, %p126
      %p128 = scmp.ne.s32.totalorder %s120, %s122
      %p129 = scmp.eq.s32.totalorder %s28, 1
      %p130 = por %p128, %p129
      %p131 = scmp.ne.s32.totalorder %s122, %s123
      %p132 = scmp.eq.s32.totalorder %s28, 0
      %p133 = por %p131, %p132
      %p134 = scmp.ne.s32.totalorder %s122, %s123
      %p135 = scmp.eq.s32.totalorder %s29, 1
      %p136 = por %p134, %p135
      %p138 = scmp.ne.s32.totalorder %s123, %s137
      %p139 = scmp.eq.s32.totalorder %s29, 0
      %p140 = por %p138, %p139
      %s142 = sadd.s32 %s141, 1
      %p145 = scmp.eq.s32.totalorder %s23, 1
      %p146 = scmp.ne.s32.totalorder %s141, %s143
      %p147 = scmp.eq.s32.totalorder %s23, 0
      %p148 = por %p146, %p147
      %p149 = scmp.ne.s32.totalorder %s141, %s143
      %p150 = scmp.eq.s32.totalorder %s28, 1
      %p151 = por %p149, %p150
      %p152 = scmp.ne.s32.totalorder %s143, %s144
      %p153 = scmp.eq.s32.totalorder %s28, 0
      %p154 = por %p152, %p153
      %p155 = scmp.ne.s32.totalorder %s143, %s144
      %p156 = scmp.eq.s32.totalorder %s29, 1
      %p157 = por %p155, %p156
      %p159 = scmp.ne.s32.totalorder %s144, %s158
      %p160 = scmp.eq.s32.totalorder %s29, 0
      %p161 = por %p159, %p160
      %s163 = sadd.s32 %s162, 1
      %p166 = scmp.eq.s32.totalorder %s23, 1
      %p167 = scmp.ne.s32.totalorder %s162, %s164
      %p168 = scmp.eq.s32.totalorder %s23, 0
      %p169 = por %p167, %p168
      %p170 = scmp.ne.s32.totalorder %s162, %s164
      %p171 = scmp.eq.s32.totalorder %s28, 1
      %p172 = por %p170, %p171
      %p173 = scmp.ne.s32.totalorder %s164, %s165
      %p174 = scmp.eq.s32.totalorder %s28, 0
      %p175 = por %p173, %p174
      %p176 = scmp.ne.s32.totalorder %s164, %s165
      %p177 = scmp.eq.s32.totalorder %s29, 1
      %p178 = por %p176, %p177
      %p180 = scmp.ne.s32.totalorder %s165, %s179
      %p181 = scmp.eq.s32.totalorder %s29, 0
      %p182 = por %p180, %p181
      %s184 = sadd.s32 %s183, 1
      %p187 = scmp.eq.s32.totalorder %s23, 1
      %p188 = scmp.ne.s32.totalorder %s183, %s185
      %p189 = scmp.eq.s32.totalorder %s23, 0
      %p190 = por %p188, %p189
      %p191 = scmp.ne.s32.totalorder %s183, %s185
      %p192 = scmp.eq.s32.totalorder %s28, 1
      %p193 = por %p191, %p192
      %p194 = scmp.ne.s32.totalorder %s185, %s186
      %p195 = scmp.eq.s32.totalorder %s28, 0
      %p196 = por %p194, %p195
      %p197 = scmp.ne.s32.totalorder %s185, %s186
      %p198 = scmp.eq.s32.totalorder %s29, 1
      %p199 = por %p197, %p198
      %p201 = scmp.ne.s32.totalorder %s186, %s200
      %p202 = scmp.eq.s32.totalorder %s29, 0
      %p203 = por %p201, %p202
      %s205 = sadd.s32 %s204, 1
      %p208 = scmp.eq.s32.totalorder %s23, 1
      %p209 = scmp.ne.s32.totalorder %s204, %s206
      %p210 = scmp.eq.s32.totalorder %s23, 0
      %p211 = por %p209, %p210
      %p212 = scmp.ne.s32.totalorder %s204, %s206
      %p213 = scmp.eq.s32.totalorder %s28, 1
      %p214 = por %p212, %p213
      %p215 = scmp.ne.s32.totalorder %s206, %s207
      %p216 = scmp.eq.s32.totalorder %s28, 0
      %p217 = por %p215, %p216
      %p218 = scmp.ne.s32.totalorder %s206, %s207
      %p219 = scmp.eq.s32.totalorder %s29, 1
      %p220 = por %p218, %p219
      %p222 = scmp.ne.s32.totalorder %s207, %s221
      %p223 = scmp.eq.s32.totalorder %s29, 0
      %p224 = por %p222, %p223
      %s226 = sadd.s32 %s225, 1
      %p229 = scmp.eq.s32.totalorder %s23, 1
      %p230 = scmp.ne.s32.totalorder %s225, %s227
      %p231 = scmp.eq.s32.totalorder %s23, 0
      %p232 = por %p230, %p231
      %p233 = scmp.ne.s32.totalorder %s225, %s227
      %p234 = scmp.eq.s32.totalorder %s28, 1
      %p235 = por %p233, %p234
      %p236 = scmp.ne.s32.totalorder %s227, %s228
      %p237 = scmp.eq.s32.totalorder %s28, 0
      %p238 = por %p236, %p237
      %p239 = scmp.ne.s32.totalorder %s227, %s228
      %p240 = scmp.eq.s32.totalorder %s29, 1
      %p241 = por %p239, %p240
      %p243 = scmp.ne.s32.totalorder %s228, %s242
      %p244 = scmp.eq.s32.totalorder %s29, 0
      %p245 = por %p243, %p244
      %s246 = ssub.s32 %s30, %s49
      %s247 = ssub.s32 %s31, %s45
      %s248 = sor.u32 %s246, %s247
      %p249 = scmp.eq.s32.totalorder %s248, 0
      %s251 = sadd.s32 %s250, 1
      %s252 = scalar_select %p249, %s250, %s251
      %p255 = pneg %p249
      %p256 = scmp.eq.s32.totalorder %s23, 1
      %p257 = por %p255, %p256
      %p258 = scmp.ne.s32.totalorder %s250, %s253
      %p259 = scmp.eq.s32.totalorder %s23, 0
      %p260 = por %p258, %p259
      %p261 = scmp.ne.s32.totalorder %s250, %s253
      %p262 = scmp.eq.s32.totalorder %s28, 1
      %p263 = por %p261, %p262
      %p264 = scmp.ne.s32.totalorder %s253, %s254
      %p265 = scmp.eq.s32.totalorder %s28, 0
      %p266 = por %p264, %p265
      %p267 = scmp.ne.s32.totalorder %s253, %s254
      %p268 = scmp.eq.s32.totalorder %s29, 1
      %p269 = por %p267, %p268
      %p271 = scmp.ne.s32.totalorder %s254, %s270
      %p272 = scmp.eq.s32.totalorder %s29, 0
      %p273 = por %p271, %p272
      %p274 = scmp.le.s32.totalorder 1, %s23
      %p275 = scmp.lt.s32.totalorder %s23, 3
      %p276 = pnand %p274, %p275
      %p277 = pneg %p276
      // Predicated region
      $region9: #{tpu_custom_call.1} parent=5 // pred_check
        _
      $region10: #{tpu_custom_call.1} parent=5 // pred_check_branch
        %279 = sbr.rel (%p276) target = $region12
      $region11: #{tpu_custom_call.1} parent=5 // pred_region
        %s280 = ssub.s32 %s23, 1
        // Predicated region
        $region13: #{tpu_custom_call.1} parent=11 // pred_check
          %p281 = pneg %p91
        $region14: #{tpu_custom_call.1} parent=11 // pred_check_branch
          %283 = sbr.rel (%p281) target = $region16
        $region15: #{tpu_custom_call.1} parent=11 // pred_region
          %285 = vsyncadd [#allocation10], 0
          %s286 = sshll.u32 %s1, 4
          %s287 = int_to_ptr.hbm [resolvable:$true] %s286
          %s288 = sshll.u32 [#allocation9], 4
          %s289 = int_to_ptr.vmem [resolvable:$true] %s288
          %294 = dma.hbm_to_vmem [thread:$0]  %s287, 256, %s289, [#allocation10], 64, 64, 4
        $region16: #{tpu_custom_call.1} parent=11 // pred_fallthru
          _
        // Predicated region
        $region17: #{tpu_custom_call.1} parent=11 // pred_check
          %p295 = pneg %p112
        $region18: #{tpu_custom_call.1} parent=11 // pred_check_branch
          %297 = sbr.rel (%p295) target = $region20
        $region19: #{tpu_custom_call.1} parent=11 // pred_region
          %299 = vsyncadd [#allocation10], 0
          %s300 = sshll.u32 %s2, 4
          %s301 = int_to_ptr.hbm [resolvable:$true] %s300
          %s302 = sshll.u32 [#allocation11], 4
          %s303 = int_to_ptr.vmem [resolvable:$true] %s302
          %308 = dma.hbm_to_vmem [thread:$0]  %s301, 256, %s303, [#allocation10], 64, 64, 4
        $region20: #{tpu_custom_call.1} parent=11 // pred_fallthru
          _
        // Predicated region
        $region21: #{tpu_custom_call.1} parent=11 // pred_check
          %p309 = pneg %p133
        $region22: #{tpu_custom_call.1} parent=11 // pred_check_branch
          %311 = sbr.rel (%p309) target = $region24
        $region23: #{tpu_custom_call.1} parent=11 // pred_region
          _
        $region24: #{tpu_custom_call.1} parent=11 // pred_fallthru
          _
        // Predicated region
        $region25: #{tpu_custom_call.1} parent=11 // pred_check
          %p312 = pneg %p154
        $region26: #{tpu_custom_call.1} parent=11 // pred_check_branch
          %314 = sbr.rel (%p312) target = $region28
        $region27: #{tpu_custom_call.1} parent=11 // pred_region
          _
        $region28: #{tpu_custom_call.1} parent=11 // pred_fallthru
          _
        // Predicated region
        $region29: #{tpu_custom_call.1} parent=11 // pred_check
          %p315 = pneg %p175
        $region30: #{tpu_custom_call.1} parent=11 // pred_check_branch
          %317 = sbr.rel (%p315) target = $region32
        $region31: #{tpu_custom_call.1} parent=11 // pred_region
          %319 = vsyncadd [#allocation13], 0
          %s320 = sshll.u32 %s5, 4
          %s321 = int_to_ptr.hbm [resolvable:$true] %s320
          %s322 = sshll.u32 [#allocation12], 4
          %s323 = int_to_ptr.vmem [resolvable:$true] %s322
          %328 = dma.hbm_to_vmem [thread:$0]  %s321, 256, %s323, [#allocation13], 64, 64, 4
        $region32: #{tpu_custom_call.1} parent=11 // pred_fallthru
          _
        // Predicated region
        $region33: #{tpu_custom_call.1} parent=11 // pred_check
          %p329 = pneg %p196
        $region34: #{tpu_custom_call.1} parent=11 // pred_check_branch
          %331 = sbr.rel (%p329) target = $region36
        $region35: #{tpu_custom_call.1} parent=11 // pred_region
          _
        $region36: #{tpu_custom_call.1} parent=11 // pred_fallthru
          _
        // Predicated region
        $region37: #{tpu_custom_call.1} parent=11 // pred_check
          %p332 = pneg %p217
        $region38: #{tpu_custom_call.1} parent=11 // pred_check_branch
          %334 = sbr.rel (%p332) target = $region40
        $region39: #{tpu_custom_call.1} parent=11 // pred_region
          _
        $region40: #{tpu_custom_call.1} parent=11 // pred_fallthru
          _
        // Predicated region
        $region41: #{tpu_custom_call.1} parent=11 // pred_check
          %p335 = pneg %p238
        $region42: #{tpu_custom_call.1} parent=11 // pred_check_branch
          %337 = sbr.rel (%p335) target = $region44
        $region43: #{tpu_custom_call.1} parent=11 // pred_region
          _
        $region44: #{tpu_custom_call.1} parent=11 // pred_fallthru
          _
      $region12: #{tpu_custom_call.1} parent=5 // pred_fallthru
        _
      %p338 = scmp.lt.s32.totalorder %s23, 2
      // Predicated region
      $region45: #{tpu_custom_call.1} parent=5 // pred_check
        %p339 = pneg %p338
      $region46: #{tpu_custom_call.1} parent=5 // pred_check_branch
        %341 = sbr.rel (%p339) target = $region48
      $region47: #{tpu_custom_call.1} parent=5 // pred_region
        // Predicated region
        $region49: #{tpu_custom_call.1} parent=47 // pred_check
          %p342 = pneg %p64
        $region50: #{tpu_custom_call.1} parent=47 // pred_check_branch
          %344 = sbr.rel (%p342) target = $region52
        $region51: #{tpu_custom_call.1} parent=47 // pred_region
          %s345 = sand.u32 %s54, 1
          %s346 = scalar_lea.sflag [#allocation7], %s345
          %s347 = sand.u32 %s54, 1
          %s348 = smul.addr %s347, 8
          %s349 = scalar_lea.vmem [#allocation6], %s348
          %351 = vsyncadd %s346, 0
          %s352 = sadd.s32 %s31, %s30
          %s353 = smul.addr %s352, 8
          %s354 = scalar_lea.hbm %s0, %s353
          %s356 = sshll.u32 %s354, 4
          %s357 = int_to_ptr.hbm [resolvable:$true] %s356
          %s358 = sshll.u32 %s349, 4
          %s359 = int_to_ptr.vmem [resolvable:$true] %s358
          %361 = dma.hbm_to_vmem [thread:$0]  %s357, 128, %s359, %s346
        $region52: #{tpu_custom_call.1} parent=47 // pred_fallthru
          _
      $region48: #{tpu_custom_call.1} parent=5 // pred_fallthru
        _
      %p362 = scmp.le.s32.totalorder 1, %s23
      %p363 = scmp.lt.s32.totalorder %s23, 3
      %p364 = pnand %p362, %p363
      %p365 = pneg %p364
      // Predicated region
      $region53: #{tpu_custom_call.1} parent=5 // pred_check
        _
      $region54: #{tpu_custom_call.1} parent=5 // pred_check_branch
        %367 = sbr.rel (%p364) target = $region56
      $region55: #{tpu_custom_call.1} parent=5 // pred_region
        %s368 = ssub.s32 %s23, 1
        %s369 = sand.u32 %s57, 1
        %s370 = scalar_lea.sflag [#allocation7], %s369
        %s371 = sand.u32 %s57, 1
        %s372 = smul.addr %s371, 8
        %s373 = scalar_lea.vmem [#allocation6], %s372
        // Predicated region
        $region57: #{tpu_custom_call.1} parent=55 // pred_check
          %p374 = pneg %p70
        $region58: #{tpu_custom_call.1} parent=55 // pred_check_branch
          %376 = sbr.rel (%p374) target = $region60
        $region59: #{tpu_custom_call.1} parent=55 // pred_region
          %378 = dma.done %s370, 128
        $region60: #{tpu_custom_call.1} parent=55 // pred_fallthru
          _
        // Predicated region
        $region61: #{tpu_custom_call.1} parent=55 // pred_check
          %p379 = pneg %p91
        $region62: #{tpu_custom_call.1} parent=55 // pred_check_branch
          %381 = sbr.rel (%p379) target = $region64
        $region63: #{tpu_custom_call.1} parent=55 // pred_region
          %383 = dma.done [#allocation10], 256
        $region64: #{tpu_custom_call.1} parent=55 // pred_fallthru
          _
        // Predicated region
        $region65: #{tpu_custom_call.1} parent=55 // pred_check
          %p384 = pneg %p112
        $region66: #{tpu_custom_call.1} parent=55 // pred_check_branch
          %386 = sbr.rel (%p384) target = $region68
        $region67: #{tpu_custom_call.1} parent=55 // pred_region
          %388 = dma.done [#allocation10], 256
        $region68: #{tpu_custom_call.1} parent=55 // pred_fallthru
          _
        // Predicated region
        $region69: #{tpu_custom_call.1} parent=55 // pred_check
          %p389 = pneg %p175
        $region70: #{tpu_custom_call.1} parent=55 // pred_check_branch
          %391 = sbr.rel (%p389) target = $region72
        $region71: #{tpu_custom_call.1} parent=55 // pred_region
          %393 = dma.done [#allocation13], 256
        $region72: #{tpu_custom_call.1} parent=55 // pred_fallthru
          _
        %s394 = sand.u32 %s57, 1
        %s395 = scalar_lea.sflag [#allocation7], %s394
        %s396 = sand.u32 %s57, 1
        %s397 = smul.addr %s396, 8
        %s398 = scalar_lea.vmem [#allocation6], %s397
        %p399 = pneg %p70
        %p400 = pneg %p67
        %p401 = pneg %p91
        %p402 = pneg %p88
        %p403 = pneg %p112
        %p404 = pneg %p109
        %p405 = pneg %p133
        %p406 = pneg %p130
        %p407 = pneg %p154
        %p408 = pneg %p151
        %p409 = pneg %p175
        %p410 = pneg %p172
        %p411 = pneg %p196
        %p412 = pneg %p193
        %p413 = pneg %p217
        %p414 = pneg %p214
        %p415 = pneg %p238
        %p416 = pneg %p235
        %p417 = pneg %p266
        %p418 = pneg %p263
        %s419 = sand.u32 %s253, 1
        %s420 = scalar_lea.sflag [#allocation8], %s419
        %s421 = sand.u32 %s253, 1
        %s422 = smul.addr %s421, 8
        %s423 = scalar_lea.vmem [#allocation14], %s422
        %v425 = vld [vmem:[%s7] sm:$0x1]
        %v426 = vld [vmem:[%s8] sm:$0x1]
        %v427 = vld [vmem:[%s373] sm:$0xff]
        %vm428 = vcmask 261120
        %v429 = vsel %vm428, %v427, 0.0
        %430 = vadd.xlane.f32.xlu0 %v429
        %v431 = vpop.xlane.xlu0 %430
        %v432 = vrcp.pop 32.0
        %v433 = vmul.f32 32.0, %v432
        %v434 = vsub.f32 1.0, %v433
        %v435 = vmul.f32 %v432, %v434
        %v436 = vadd.f32 %v432, %v435
        %vm437 = vweird.f32 %v432
        %v438 = vsel %vm437, %v432, %v436
        %v439 = vmul.f32 %v431, %v438
        %v440 = vsub.f32 %v427, %v439
        %v441 = vmul.f32 %v440, %v440
        %v442 = vsel %vm428, %v441, 0.0
        %443 = vadd.xlane.f32.xlu0 %v442
        %v444 = vpop.xlane.xlu0 %443
        %v445 = vmul.f32 %v444, %v438
        %v446 = vadd.f32 %v445, 1e-05
        %v447 = vrsqrt.pop %v446
        %v448 = vmul.f32 %v447, %v446
        %v449 = vmul.f32 %v448, %v447
        %v450 = vmul.f32 0.5, %v449
        %v451 = vsub.f32 1.5, %v450
        %v452 = vmul.f32 %v447, %v451
        %vm453 = vweird.f32 %v446
        %vm454 = vweird.f32 %v447
        %vm455 = vmor %vm453, %vm454
        %v456 = vsel %vm455, %v447, %v452
        %v457 = vmul.f32 %v440, %v456
        %v459 = vperm.slane %v425, 0
        %v461 = vmul.f32 %v457, %v459
        %v463 = vperm.slane %v426, 0
        %v465 = vadd.f32 %v461, %v463
        %v466 = vpack.c.bf16 %v465, %v465
        %p467 = scmp.eq.s32.totalorder %s35, 0
        // Predicated region
        $region73: #{tpu_custom_call.1} parent=55 // pred_check
          %p468 = pneg %p467
        $region74: #{tpu_custom_call.1} parent=55 // pred_check_branch
          %470 = sbr.rel (%p468) target = $region76
        $region75: #{tpu_custom_call.1} parent=55 // pred_region
          %vm471 = vcmask 7168
          %472 = vst.msk [vmem:[#allocation3] sm:$0xff] %vm471, -1e+30
          %473 = vst.msk [vmem:[#allocation3 + $0x8] sm:$0xff] %vm471, -1e+30
          %474 = vst.msk [vmem:[#allocation3 + $0x10] sm:$0xff] %vm471, -1e+30
          %475 = vst.msk [vmem:[#allocation3 + $0x18] sm:$0xff] %vm471, -1e+30
          %476 = vst.msk [vmem:[#allocation4] sm:$0xff] %vm471, 0.0
          %477 = vst.msk [vmem:[#allocation4 + $0x8] sm:$0xff] %vm471, 0.0
          %478 = vst.msk [vmem:[#allocation4 + $0x10] sm:$0xff] %vm471, 0.0
          %479 = vst.msk [vmem:[#allocation4 + $0x18] sm:$0xff] %vm471, 0.0
          %vm480 = vcmask 64512
          %481 = vst.msk [vmem:[#allocation5] sm:$0xff] %vm480, 0.0
          %482 = vst.msk [vmem:[#allocation5 + $0x8] sm:$0xff] %vm480, 0.0
          %483 = vst.msk [vmem:[#allocation5 + $0x10] sm:$0xff] %vm480, 0.0
          %484 = vst.msk [vmem:[#allocation5 + $0x18] sm:$0xff] %vm480, 0.0
          %v485 = vld [vmem:[#allocation9] sm:$0xf]
          %v486 = vld [vmem:[#allocation9 + $0x4] sm:$0xf]
          %v487 = vld [vmem:[#allocation9 + $0x8] sm:$0xf]
          %v488 = vld [vmem:[#allocation9 + $0xc] sm:$0xf]
          %v489 = vld [vmem:[%s3] sm:$0x1]
          %v491 = vperm.slane %v489, 0
          %v497 = vunpack.c.l.b16 %v485
          %v498 = vunpack.c.l.b16 %v486
          %v499 = vunpack.c.l.b16 %v487
          %v500 = vunpack.c.l.b16 %v488
          %v501 = vpack.c.b16 %v498, %v497
          %v502 = vpack.c.b16 %v500, %v499
          %v506 = vsel %vm428, %v466, 0
          %508 = vmatpush.bf16.msra.mxu0 0
          %509 = vmatpush.bf16.msra.mxu0 0
          %510 = vmatpush.bf16.msra.mxu0 0
          %511 = vmatpush.bf16.msra.mxu0 0
          %512 = vmatpush.bf16.msra.mxu0 0
          %513 = vmatpush.bf16.msra.mxu0 0
          %514 = vmatpush.bf16.msra.mxu0 %v502
          %515 = vmatpush.bf16.msra.mxu0 %v501
          %516 = vmatmul.bf16.gmra.mxu0 %v506
          %v517 = vpop.f32.mrf.mxu0
          %v518 = vadd.f32 %v491, %v517
          %v519 = vpop.f32.mrf.mxu0
          %520 = vdwg.mxu0
          %v521 = vpack.c.bf16 %v518, %v518
          %523 = vrot.lane.b32.xlu0 %v521, 120
          %v524 = vpop.permute.xlu0 %523
          %526 = vrot.lane.b32.xlu0 %v521, 112
          %v527 = vpop.permute.xlu0 %526
          %529 = vrot.lane.b32.xlu0 %v521, 104
          %v530 = vpop.permute.xlu0 %529
          %vm532 = vcmask 60416
          %533 = vst.msk [vmem:[#allocation2] sm:$0xf] %vm532, %v521
          %534 = vst.msk [vmem:[#allocation2 + $0x4] sm:$0xf] %vm532, %v524
          %535 = vst.msk [vmem:[#allocation2 + $0x8] sm:$0xf] %vm532, %v527
          %536 = vst.msk [vmem:[#allocation2 + $0xc] sm:$0xf] %vm532, %v530
        $region76: #{tpu_custom_call.1} parent=55 // pred_fallthru
          _
        %s537 = smul.u32 %s34, 8
        %s538 = smul.u32 %s35, 8
        %s539 = sadd.s32 %s537, 7
        %p540 = scmp.le.s32.totalorder %s538, %s539
        // Predicated region
        $region77: #{tpu_custom_call.1} parent=55 // pred_check
          %p541 = pneg %p540
        $region78: #{tpu_custom_call.1} parent=55 // pred_check_branch
          %543 = sbr.rel (%p541) target = $region80
        $region79: #{tpu_custom_call.1} parent=55 // pred_region
          %v544 = vld [vmem:[#allocation11] sm:$0xf]
          %v545 = vld [vmem:[#allocation11 + $0x4] sm:$0xf]
          %v546 = vld [vmem:[#allocation11 + $0x8] sm:$0xf]
          %v547 = vld [vmem:[#allocation11 + $0xc] sm:$0xf]
          %v548 = vld [vmem:[%s4] sm:$0x1]
          %v550 = vperm.slane %v548, 0
          %v556 = vunpack.c.l.b16 %v544
          %v557 = vunpack.c.l.b16 %v545
          %v558 = vunpack.c.l.b16 %v546
          %v559 = vunpack.c.l.b16 %v547
          %v560 = vpack.c.b16 %v557, %v556
          %v561 = vpack.c.b16 %v559, %v558
          %v565 = vsel %vm428, %v466, 0
          %567 = vmatpush.bf16.msra.mxu0 0
          %568 = vmatpush.bf16.msra.mxu0 0
          %569 = vmatpush.bf16.msra.mxu0 0
          %570 = vmatpush.bf16.msra.mxu0 0
          %571 = vmatpush.bf16.msra.mxu0 0
          %572 = vmatpush.bf16.msra.mxu0 0
          %573 = vmatpush.bf16.msra.mxu0 %v561
          %574 = vmatpush.bf16.msra.mxu0 %v560
          %575 = vmatmul.bf16.gmra.mxu0 %v565
          %v576 = vpop.f32.mrf.mxu0
          %v577 = vadd.f32 %v550, %v576
          %v578 = vpop.f32.mrf.mxu0
          %579 = vdwg.mxu0
          %v580 = vpack.c.bf16 %v577, %v577
          %582 = vrot.lane.b32.xlu0 %v580, 120
          %v583 = vpop.permute.xlu0 %582
          %584 = vrot.lane.b32.xlu0 %v580, 112
          %v585 = vpop.permute.xlu0 %584
          %586 = vrot.lane.b32.xlu0 %v580, 104
          %v587 = vpop.permute.xlu0 %586
          %v588 = vld [vmem:[#allocation2] sm:$0xf]
          %v589 = vld [vmem:[#allocation2 + $0x4] sm:$0xf]
          %v590 = vld [vmem:[#allocation2 + $0x8] sm:$0xf]
          %v591 = vld [vmem:[#allocation2 + $0xc] sm:$0xf]
          %vm592 = vcmask 64512
          %v594 = vsel %vm592, %v588, 0
          %v597 = vsel %vm592, %v580, 0
          %599 = vmatpush.bf16.xpose.msra.mxu0 0
          %600 = vmatpush.bf16.xpose.msra.mxu0 0
          %601 = vmatpush.bf16.xpose.msra.mxu0 0
          %602 = vmatpush.bf16.xpose.msra.mxu0 0
          %603 = vmatpush.bf16.xpose.msra.mxu0 0
          %604 = vmatpush.bf16.xpose.msra.mxu0 0
          %605 = vmatpush.bf16.xpose.msra.mxu0 0
          %606 = vmatpush.bf16.xpose.msra.mxu0 %v597
          %607 = vmatmul.bf16.gmra.mxu0 %v594
          %v608 = vpop.f32.mrf.mxu0
          %v609 = vadd.f32 0.0, %v608
          %v610 = vpop.f32.mrf.mxu0
          %611 = vdwg.mxu0
          %v613 = vsel %vm592, %v589, 0
          %v616 = vsel %vm592, %v583, 0
          %618 = vmatpush.bf16.xpose.msra.mxu0 0
          %619 = vmatpush.bf16.xpose.msra.mxu0 0
          %620 = vmatpush.bf16.xpose.msra.mxu0 0
          %621 = vmatpush.bf16.xpose.msra.mxu0 0
          %622 = vmatpush.bf16.xpose.msra.mxu0 0
          %623 = vmatpush.bf16.xpose.msra.mxu0 0
          %624 = vmatpush.bf16.xpose.msra.mxu0 0
          %625 = vmatpush.bf16.xpose.msra.mxu0 %v616
          %626 = vmatmul.bf16.gmra.mxu0 %v613
          %v627 = vpop.f32.mrf.mxu0
          %v628 = vadd.f32 0.0, %v627
          %v629 = vpop.f32.mrf.mxu0
          %630 = vdwg.mxu0
          %v632 = vsel %vm592, %v590, 0
          %v635 = vsel %vm592, %v585, 0
          %637 = vmatpush.bf16.xpose.msra.mxu0 0
          %638 = vmatpush.bf16.xpose.msra.mxu0 0
          %639 = vmatpush.bf16.xpose.msra.mxu0 0
          %640 = vmatpush.bf16.xpose.msra.mxu0 0
          %641 = vmatpush.bf16.xpose.msra.mxu0 0
          %642 = vmatpush.bf16.xpose.msra.mxu0 0
          %643 = vmatpush.bf16.xpose.msra.mxu0 0
          %644 = vmatpush.bf16.xpose.msra.mxu0 %v635
          %645 = vmatmul.bf16.gmra.mxu0 %v632
          %v646 = vpop.f32.mrf.mxu0
          %v647 = vadd.f32 0.0, %v646
          %v648 = vpop.f32.mrf.mxu0
          %649 = vdwg.mxu0
          %v651 = vsel %vm592, %v591, 0
          %v654 = vsel %vm592, %v587, 0
          %656 = vmatpush.bf16.xpose.msra.mxu0 0
          %657 = vmatpush.bf16.xpose.msra.mxu0 0
          %658 = vmatpush.bf16.xpose.msra.mxu0 0
          %659 = vmatpush.bf16.xpose.msra.mxu0 0
          %660 = vmatpush.bf16.xpose.msra.mxu0 0
          %661 = vmatpush.bf16.xpose.msra.mxu0 0
          %662 = vmatpush.bf16.xpose.msra.mxu0 0
          %663 = vmatpush.bf16.xpose.msra.mxu0 %v654
          %664 = vmatmul.bf16.gmra.mxu0 %v651
          %v665 = vpop.f32.mrf.mxu0
          %v666 = vadd.f32 0.0, %v665
          %v667 = vpop.f32.mrf.mxu0
          %668 = vdwg.mxu0
          %v669 = vlaneseq
          %v670 = vshrl.u32 %v669, 7
          %v671 = vstv %s537
          %v672 = vadd.s32 %v671, %v670
          %v673 = vlaneseq
          %v674 = vand.u32 %v673, 127
          %v675 = vstv %s538
          %v676 = vadd.s32 %v675, %v674
          %vm677 = vcmp.ge.s32.totalorder %v672, %v676
          %v678 = vsel %vm677, 1, 0
          %vm679 = vcmp.eq.s32.totalorder %v678, 1
          %v680 = vsel %vm679, %v609, -1e+30
          %v681 = vsel %vm679, %v628, -1e+30
          %v682 = vsel %vm679, %v647, -1e+30
          %v683 = vsel %vm679, %v666, -1e+30
          %v684 = vld [vmem:[#allocation3] sm:$0xff]
          %v685 = vld [vmem:[#allocation3 + $0x8] sm:$0xff]
          %v686 = vld [vmem:[#allocation3 + $0x10] sm:$0xff]
          %v687 = vld [vmem:[#allocation3 + $0x18] sm:$0xff]
          %v688 = vsel %vm592, %v680, -inf
          %689 = vmax.xlane.f32.xlu0 %v688
          %v690 = vpop.xlane.xlu0 %689
          %v691 = vsel %vm592, %v681, -inf
          %692 = vmax.xlane.f32.xlu0 %v691
          %v693 = vpop.xlane.xlu0 %692
          %v694 = vsel %vm592, %v682, -inf
          %695 = vmax.xlane.f32.xlu0 %v694
          %v696 = vpop.xlane.xlu0 %695
          %v697 = vsel %vm592, %v683, -inf
          %698 = vmax.xlane.f32.xlu0 %v697
          %v699 = vpop.xlane.xlu0 %698
          %v700 = vmax.f32 %v684, %v690
          %v701 = vmax.f32 %v685, %v693
          %v702 = vmax.f32 %v686, %v696
          %v703 = vmax.f32 %v687, %v699
          %v704 = vsub.f32 %v684, %v700
          %v705 = vsub.f32 %v685, %v701
          %v706 = vsub.f32 %v686, %v702
          %v707 = vsub.f32 %v687, %v703
          %v708 = vmul.f32 %v704, 1.442695
          %v709 = vpow.pop %v708
          %v710 = vmul.f32 %v705, 1.442695
          %v711 = vpow.pop %v710
          %v712 = vmul.f32 %v706, 1.442695
          %v713 = vpow.pop %v712
          %v714 = vmul.f32 %v707, 1.442695
          %v715 = vpow.pop %v714
          %717 = vset.pattern.permute.xlu0 0
          %718 = vperm.xlu0 %717, %v700
          %v719 = vpop.permute.xlu0 %718
          %722 = vset.pattern.permute.xlu0 0
          %723 = vperm.xlu0 %722, %v701
          %v724 = vpop.permute.xlu0 %723
          %727 = vset.pattern.permute.xlu0 0
          %728 = vperm.xlu0 %727, %v702
          %v729 = vpop.permute.xlu0 %728
          %732 = vset.pattern.permute.xlu0 0
          %733 = vperm.xlu0 %732, %v703
          %v734 = vpop.permute.xlu0 %733
          %v736 = vsub.f32 %v680, %v719
          %v737 = vsub.f32 %v681, %v724
          %v738 = vsub.f32 %v682, %v729
          %v739 = vsub.f32 %v683, %v734
          %v740 = vmul.f32 %v736, 1.442695
          %v741 = vpow.pop %v740
          %v742 = vmul.f32 %v737, 1.442695
          %v743 = vpow.pop %v742
          %v744 = vmul.f32 %v738, 1.442695
          %v745 = vpow.pop %v744
          %v746 = vmul.f32 %v739, 1.442695
          %v747 = vpow.pop %v746
          %v748 = vld [vmem:[#allocation4] sm:$0xff]
          %v749 = vld [vmem:[#allocation4 + $0x8] sm:$0xff]
          %v750 = vld [vmem:[#allocation4 + $0x10] sm:$0xff]
          %v751 = vld [vmem:[#allocation4 + $0x18] sm:$0xff]
          %v752 = vmul.f32 %v709, %v748
          %v753 = vmul.f32 %v711, %v749
          %v754 = vmul.f32 %v713, %v750
          %v755 = vmul.f32 %v715, %v751
          %v756 = vsel %vm592, %v741, 0.0
          %757 = vadd.xlane.f32.xlu0 %v756
          %v758 = vpop.xlane.xlu0 %757
          %v759 = vsel %vm592, %v743, 0.0
          %760 = vadd.xlane.f32.xlu0 %v759
          %v761 = vpop.xlane.xlu0 %760
          %v762 = vsel %vm592, %v745, 0.0
          %763 = vadd.xlane.f32.xlu0 %v762
          %v764 = vpop.xlane.xlu0 %763
          %v765 = vsel %vm592, %v747, 0.0
          %766 = vadd.xlane.f32.xlu0 %v765
          %v767 = vpop.xlane.xlu0 %766
          %v768 = vadd.f32 %v752, %v758
          %v769 = vadd.f32 %v753, %v761
          %v770 = vadd.f32 %v754, %v764
          %v771 = vadd.f32 %v755, %v767
          %vm772 = vcmask 7168
          %773 = vst.msk [vmem:[#allocation4] sm:$0xff] %vm772, %v768
          %774 = vst.msk [vmem:[#allocation4 + $0x8] sm:$0xff] %vm772, %v769
          %775 = vst.msk [vmem:[#allocation4 + $0x10] sm:$0xff] %vm772, %v770
          %776 = vst.msk [vmem:[#allocation4 + $0x18] sm:$0xff] %vm772, %v771
          %v777 = vld [vmem:[#allocation5] sm:$0xff]
          %v778 = vld [vmem:[#allocation5 + $0x8] sm:$0xff]
          %v779 = vld [vmem:[#allocation5 + $0x10] sm:$0xff]
          %v780 = vld [vmem:[#allocation5 + $0x18] sm:$0xff]
          %782 = vset.pattern.permute.xlu0 0
          %783 = vperm.xlu0 %782, %v709
          %v784 = vpop.permute.xlu0 %783
          %787 = vset.pattern.permute.xlu0 0
          %788 = vperm.xlu0 %787, %v711
          %v789 = vpop.permute.xlu0 %788
          %792 = vset.pattern.permute.xlu0 0
          %793 = vperm.xlu0 %792, %v713
          %v794 = vpop.permute.xlu0 %793
          %797 = vset.pattern.permute.xlu0 0
          %798 = vperm.xlu0 %797, %v715
          %v799 = vpop.permute.xlu0 %798
          %v801 = vmul.f32 %v784, %v777
          %v802 = vmul.f32 %v789, %v778
          %v803 = vmul.f32 %v794, %v779
          %v804 = vmul.f32 %v799, %v780
          %v805 = vpack.c.bf16 %v741, %v741
          %v806 = vpack.c.bf16 %v743, %v743
          %v807 = vpack.c.bf16 %v745, %v745
          %v808 = vpack.c.bf16 %v747, %v747
          %v809 = vunpack.c.l.b16 %v580
          %v810 = vpack.c.b16 %v809, %v809
          %811 = vrot.lane.b32.xlu0 %v810, 96
          %v812 = vpop.permute.xlu0 %811
          %v814 = vsel %vm592, %v805, 0
          %vm816 = vcmask 1043456
          %v818 = vsel %vm816, %v812, 0
          %820 = vmatpush.bf16.msra.mxu0 0
          %821 = vmatpush.bf16.msra.mxu0 0
          %822 = vmatpush.bf16.msra.mxu0 0
          %823 = vmatpush.bf16.msra.mxu0 0
          %824 = vmatpush.bf16.msra.mxu0 0
          %825 = vmatpush.bf16.msra.mxu0 0
          %826 = vmatpush.bf16.msra.mxu0 0
          %827 = vmatpush.bf16.msra.mxu0 %v818
          %828 = vmatmul.bf16.gmra.mxu0 %v814
          %v829 = vpop.f32.mrf.mxu0
          %v830 = vadd.f32 0.0, %v829
          %v831 = vpop.f32.mrf.mxu0
          %832 = vdwg.mxu0
          %v833 = vunpack.c.l.b16 %v583
          %v834 = vpack.c.b16 %v833, %v833
          %835 = vrot.lane.b32.xlu0 %v834, 96
          %v836 = vpop.permute.xlu0 %835
          %v838 = vsel %vm592, %v806, 0
          %v841 = vsel %vm816, %v836, 0
          %843 = vmatpush.bf16.msra.mxu0 0
          %844 = vmatpush.bf16.msra.mxu0 0
          %845 = vmatpush.bf16.msra.mxu0 0
          %846 = vmatpush.bf16.msra.mxu0 0
          %847 = vmatpush.bf16.msra.mxu0 0
          %848 = vmatpush.bf16.msra.mxu0 0
          %849 = vmatpush.bf16.msra.mxu0 0
          %850 = vmatpush.bf16.msra.mxu0 %v841
          %851 = vmatmul.bf16.gmra.mxu0 %v838
          %v852 = vpop.f32.mrf.mxu0
          %v853 = vadd.f32 0.0, %v852
          %v854 = vpop.f32.mrf.mxu0
          %855 = vdwg.mxu0
          %v856 = vunpack.c.l.b16 %v585
          %v857 = vpack.c.b16 %v856, %v856
          %858 = vrot.lane.b32.xlu0 %v857, 96
          %v859 = vpop.permute.xlu0 %858
          %v861 = vsel %vm592, %v807, 0
          %v864 = vsel %vm816, %v859, 0
          %866 = vmatpush.bf16.msra.mxu0 0
          %867 = vmatpush.bf16.msra.mxu0 0
          %868 = vmatpush.bf16.msra.mxu0 0
          %869 = vmatpush.bf16.msra.mxu0 0
          %870 = vmatpush.bf16.msra.mxu0 0
          %871 = vmatpush.bf16.msra.mxu0 0
          %872 = vmatpush.bf16.msra.mxu0 0
          %873 = vmatpush.bf16.msra.mxu0 %v864
          %874 = vmatmul.bf16.gmra.mxu0 %v861
          %v875 = vpop.f32.mrf.mxu0
          %v876 = vadd.f32 0.0, %v875
          %v877 = vpop.f32.mrf.mxu0
          %878 = vdwg.mxu0
          %v879 = vunpack.c.l.b16 %v587
          %v880 = vpack.c.b16 %v879, %v879
          %881 = vrot.lane.b32.xlu0 %v880, 96
          %v882 = vpop.permute.xlu0 %881
          %v884 = vsel %vm592, %v808, 0
          %v887 = vsel %vm816, %v882, 0
          %889 = vmatpush.bf16.msra.mxu0 0
          %890 = vmatpush.bf16.msra.mxu0 0
          %891 = vmatpush.bf16.msra.mxu0 0
          %892 = vmatpush.bf16.msra.mxu0 0
          %893 = vmatpush.bf16.msra.mxu0 0
          %894 = vmatpush.bf16.msra.mxu0 0
          %895 = vmatpush.bf16.msra.mxu0 0
          %896 = vmatpush.bf16.msra.mxu0 %v887
          %897 = vmatmul.bf16.gmra.mxu0 %v884
          %v898 = vpop.f32.mrf.mxu0
          %v899 = vadd.f32 0.0, %v898
          %v900 = vpop.f32.mrf.mxu0
          %901 = vdwg.mxu0
          %v902 = vadd.f32 %v801, %v830
          %v903 = vadd.f32 %v802, %v853
          %v904 = vadd.f32 %v803, %v876
          %v905 = vadd.f32 %v804, %v899
          %906 = vst.msk [vmem:[#allocation5] sm:$0xff] %vm592, %v902
          %907 = vst.msk [vmem:[#allocation5 + $0x8] sm:$0xff] %vm592, %v903
          %908 = vst.msk [vmem:[#allocation5 + $0x10] sm:$0xff] %vm592, %v904
          %909 = vst.msk [vmem:[#allocation5 + $0x18] sm:$0xff] %vm592, %v905
          %910 = vst.msk [vmem:[#allocation3] sm:$0xff] %vm772, %v700
          %911 = vst.msk [vmem:[#allocation3 + $0x8] sm:$0xff] %vm772, %v701
          %912 = vst.msk [vmem:[#allocation3 + $0x10] sm:$0xff] %vm772, %v702
          %913 = vst.msk [vmem:[#allocation3 + $0x18] sm:$0xff] %vm772, %v703
        $region80: #{tpu_custom_call.1} parent=55 // pred_fallthru
          _
        // Predicated region
        $region81: #{tpu_custom_call.1} parent=55 // pred_check
          %p914 = pneg %p467
        $region82: #{tpu_custom_call.1} parent=55 // pred_check_branch
          %916 = sbr.rel (%p914) target = $region84
        $region83: #{tpu_custom_call.1} parent=55 // pred_region
          %v917 = vld [vmem:[#allocation5] sm:$0xff]
          %v918 = vld [vmem:[#allocation5 + $0x8] sm:$0xff]
          %v919 = vld [vmem:[#allocation5 + $0x10] sm:$0xff]
          %v920 = vld [vmem:[#allocation5 + $0x18] sm:$0xff]
          %v921 = vld [vmem:[#allocation4] sm:$0xff]
          %v922 = vld [vmem:[#allocation4 + $0x8] sm:$0xff]
          %v923 = vld [vmem:[#allocation4 + $0x10] sm:$0xff]
          %v924 = vld [vmem:[#allocation4 + $0x18] sm:$0xff]
          %v925 = vrcp.pop %v921
          %v926 = vrcp.pop %v922
          %v927 = vrcp.pop %v923
          %v928 = vrcp.pop %v924
          %930 = vset.pattern.permute.xlu0 0
          %931 = vperm.xlu0 %930, %v925
          %v932 = vpop.permute.xlu0 %931
          %935 = vset.pattern.permute.xlu0 0
          %936 = vperm.xlu0 %935, %v926
          %v937 = vpop.permute.xlu0 %936
          %940 = vset.pattern.permute.xlu0 0
          %941 = vperm.xlu0 %940, %v927
          %v942 = vpop.permute.xlu0 %941
          %945 = vset.pattern.permute.xlu0 0
          %946 = vperm.xlu0 %945, %v928
          %v947 = vpop.permute.xlu0 %946
          %v949 = vmul.f32 %v917, %v932
          %v950 = vmul.f32 %v918, %v937
          %v951 = vmul.f32 %v919, %v942
          %v952 = vmul.f32 %v920, %v947
          %v953 = vpack.c.bf16 %v949, %v949
          %v954 = vpack.c.bf16 %v950, %v950
          %v955 = vpack.c.bf16 %v951, %v951
          %v956 = vpack.c.bf16 %v952, %v952
          %v958 = vunpack.c.l.b16 %v954
          %v959 = vpack.c.b16 %v958, %v958
          %960 = vrot.lane.b32.xlu0 %v959, 8
          %v961 = vpop.permute.xlu0 %960
          %v963 = vunpack.c.l.b16 %v955
          %v964 = vpack.c.b16 %v963, %v963
          %965 = vrot.lane.b32.xlu0 %v964, 16
          %v966 = vpop.permute.xlu0 %965
          %v968 = vunpack.c.l.b16 %v956
          %v969 = vpack.c.b16 %v968, %v968
          %970 = vrot.lane.b32.xlu0 %v969, 24
          %v971 = vpop.permute.xlu0 %970
          %vm972 = vcmask 64512
          %v975 = vsel %vm972, %v953, %v961
          %vm976 = vcmask 130048
          %v978 = vsel %vm976, %v975, %v966
          %vm979 = vcmask 195584
          %v981 = vsel %vm979, %v978, %v971
          %v982 = vld [vmem:[#allocation12] sm:$0xf]
          %v983 = vld [vmem:[#allocation12 + $0x4] sm:$0xf]
          %v984 = vld [vmem:[#allocation12 + $0x8] sm:$0xf]
          %v985 = vld [vmem:[#allocation12 + $0xc] sm:$0xf]
          %v986 = vld [vmem:[%s6] sm:$0x1]
          %v988 = vperm.slane %v986, 0
          %v994 = vunpack.c.l.b16 %v982
          %v995 = vunpack.c.l.b16 %v983
          %v996 = vunpack.c.l.b16 %v984
          %v997 = vunpack.c.l.b16 %v985
          %v998 = vpack.c.b16 %v995, %v994
          %v999 = vpack.c.b16 %v997, %v996
          %v1002 = vsel %vm428, %v981, 0
          %1004 = vmatpush.bf16.msra.mxu0 0
          %1005 = vmatpush.bf16.msra.mxu0 0
          %1006 = vmatpush.bf16.msra.mxu0 0
          %1007 = vmatpush.bf16.msra.mxu0 0
          %1008 = vmatpush.bf16.msra.mxu0 0
          %1009 = vmatpush.bf16.msra.mxu0 0
          %1010 = vmatpush.bf16.msra.mxu0 %v999
          %1011 = vmatpush.bf16.msra.mxu0 %v998
          %1012 = vmatmul.bf16.gmra.mxu0 %v1002
          %v1013 = vpop.f32.mrf.mxu0
          %v1014 = vadd.f32 %v988, %v1013
          %v1015 = vpop.f32.mrf.mxu0
          %1016 = vdwg.mxu0
          %v1017 = vld [vmem:[%s373] sm:$0xff]
          %v1018 = vadd.f32 %v1014, %v1017
          %1019 = vst.msk [vmem:[%s423] sm:$0xff] %vm428, %v1018
        $region84: #{tpu_custom_call.1} parent=55 // pred_fallthru
          _
        %s1020 = sand.u32 %s253, 1
        %s1021 = scalar_lea.sflag [#allocation8], %s1020
        %s1022 = sand.u32 %s253, 1
        %s1023 = smul.addr %s1022, 8
        %s1024 = scalar_lea.vmem [#allocation14], %s1023
        // Predicated region
        $region85: #{tpu_custom_call.1} parent=55 // pred_check
          %p1025 = pneg %p263
        $region86: #{tpu_custom_call.1} parent=55 // pred_check_branch
          %1027 = sbr.rel (%p1025) target = $region88
        $region87: #{tpu_custom_call.1} parent=55 // pred_region
          %1029 = vsyncadd %s1021, 0
          %s1030 = sadd.s32 %s34, %s33
          %s1031 = smul.addr %s1030, 8
          %s1032 = scalar_lea.hbm %s9, %s1031
          %s1034 = sshll.u32 %s1024, 4
          %s1035 = int_to_ptr.vmem [resolvable:$true] %s1034
          %s1036 = sshll.u32 %s1032, 4
          %s1037 = int_to_ptr.hbm [resolvable:$true] %s1036
          %1039 = dma.vmem_to_hbm [thread:$0]  %s1035, 128, %s1037, %s1021
        $region88: #{tpu_custom_call.1} parent=55 // pred_fallthru
          _
      $region56: #{tpu_custom_call.1} parent=5 // pred_fallthru
        _
      %p1040 = scmp.le.s32.totalorder 2, %s23
      // Predicated region
      $region89: #{tpu_custom_call.1} parent=5 // pred_check
        %p1041 = pneg %p1040
      $region90: #{tpu_custom_call.1} parent=5 // pred_check_branch
        %1043 = sbr.rel (%p1041) target = $region92
      $region91: #{tpu_custom_call.1} parent=5 // pred_region
        %s1044 = ssub.s32 %s23, 2
        // Predicated region
        $region93: #{tpu_custom_call.1} parent=91 // pred_check
          %p1045 = pneg %p269
        $region94: #{tpu_custom_call.1} parent=91 // pred_check_branch
          %1047 = sbr.rel (%p1045) target = $region96
        $region95: #{tpu_custom_call.1} parent=91 // pred_region
          %s1048 = sand.u32 %s254, 1
          %s1049 = scalar_lea.sflag [#allocation8], %s1048
          %s1050 = sand.u32 %s254, 1
          %s1051 = smul.addr %s1050, 8
          %s1052 = scalar_lea.vmem [#allocation14], %s1051
          %1054 = dma.done %s1049, 128
        $region96: #{tpu_custom_call.1} parent=91 // pred_fallthru
          _
      $region92: #{tpu_custom_call.1} parent=5 // pred_fallthru
        _
    $region6: #{tpu_custom_call.1} parent=1 // loop_footer
      %s27 = sadd.s32 1, %s23
    $region7: #{tpu_custom_call.1} parent=1 // loop_footer_branch
      %22 = sbr.rel target = $region3
    $region8: #{tpu_custom_call.1} parent=1 // loop_exit
      _
    %1055 = vsyncpa [#allocation7], 1
    %s1056 = scalar_lea.sflag [#allocation7], 1
    %1057 = vsyncpa %s1056, 1
    %1058 = vsyncpa [#allocation10], 1
    %1059 = vsyncpa [#allocation13], 1
    %1060 = vsyncpa [#allocation8], 1
    %s1061 = scalar_lea.sflag [#allocation8], 1
    %1062 = vsyncpa %s1061, 1

// kernel: tpu_custom_call.1
$region0: #{tpu_custom_call.1}
  #allocation0 [shape = 'u32[]', space=smem, size = 0x4, offset = 0x4, fixed_abs, tag = 'smem constant byte address 0x4 - core index']
  #allocation1 [shape = 'u32[72,128]{1,0:T(1,128)}', space=vmem, size = 0x9000, scoped, tag = 'internal scratch']
  #allocation2 [shape = 'bf16[4,8,8]{2,1,0:T(8,128)(2,1)}', space=vmem, size = 0x2000, scoped, tag = 'scratch operand']
  #allocation3 [shape = 'f32[4,8,1]{2,1,0:T(8,128)}', space=vmem, size = 0x4000, scoped, tag = 'scratch operand']
  #allocation4 [shape = 'f32[4,8,1]{2,1,0:T(8,128)}', space=vmem, size = 0x4000, scoped, tag = 'scratch operand']
  #allocation5 [shape = 'f32[4,8,8]{2,1,0:T(8,128)}', space=vmem, size = 0x4000, scoped, tag = 'scratch operand']
  %s0 = inlined_call_operand.hbm [shape: f32[2,8,32], index: 0, kind: input, shape index: {}]
  %s1 = inlined_call_operand.hbm [shape: bf16[32,32], index: 1, kind: input, shape index: {}]
  %s2 = inlined_call_operand.hbm [shape: bf16[32,64], index: 2, kind: input, shape index: {}]
  %s3 = inlined_call_operand.vmem [shape: f32[1,32], index: 3, kind: input, shape index: {}]
  %s4 = inlined_call_operand.vmem [shape: f32[1,64], index: 4, kind: input, shape index: {}]
  %s5 = inlined_call_operand.hbm [shape: bf16[32,32], index: 5, kind: input, shape index: {}]
  %s6 = inlined_call_operand.vmem [shape: f32[1,32], index: 6, kind: input, shape index: {}]
  %s7 = inlined_call_operand.vmem [shape: f32[1,32], index: 7, kind: input, shape index: {}]
  %s8 = inlined_call_operand.vmem [shape: f32[1,32], index: 8, kind: input, shape index: {}]
  %s9 = inlined_call_operand.hbm [shape: f32[2,8,32], index: 9, kind: output, shape index: {}]
  %s10 = sld [smem:[#allocation0]]
  $region97: #{tpu_custom_call.1} parent=0
    _
  %s12 = ssub.s32 1, %s10
  %s13 = scalar_select 0, %s12, %s10
  $region1: #{tpu_custom_call.1} parent=0
    #allocation6 [shape = 'u8[8192]{0}', space=vmem, size = 0x2000, scoped, tag = 'input window, operand 0']
    #allocation7 [shape = 's32[2]{0}', space=sflag, size = 0x8, scoped, tag = 'scoped memory for tpu_custom_call.1']
    #allocation8 [shape = 's32[2]{0}', space=sflag, size = 0x8, scoped, tag = 'scoped memory for tpu_custom_call.1']
    #allocation9 [shape = 'u8[8192]{0}', space=vmem, size = 0x2000, scoped, tag = 'input window, operand 1, single buffered']
    #allocation10 [shape = 's32[1]{0}', space=sflag, size = 0x4, scoped, tag = 'scoped memory for tpu_custom_call.1']
    #allocation11 [shape = 'u8[8192]{0}', space=vmem, size = 0x2000, scoped, tag = 'input window, operand 2, single buffered']
    #allocation12 [shape = 'u8[8192]{0}', space=vmem, size = 0x2000, scoped, tag = 'input window, operand 5, single buffered']
    #allocation13 [shape = 's32[1]{0}', space=sflag, size = 0x4, scoped, tag = 'scoped memory for tpu_custom_call.1']
    #allocation14 [shape = 'u8[8192]{0}', space=vmem, size = 0x2000, scoped, tag = 'output window, operand 0']
    %14 = vsyncpa [#allocation7], 0
    %s15 = scalar_lea.sflag [#allocation7], 1
    %16 = vsyncpa %s15, 0
    %17 = vsyncpa [#allocation10], 0
    %18 = vsyncpa [#allocation13], 0
    %19 = vsyncpa [#allocation8], 0
    %s20 = scalar_lea.sflag [#allocation8], 1
    %21 = vsyncpa %s20, 0
    loop: start=0, step=1, limit=4
    $region2: #{tpu_custom_call.1} parent=1 // loop_pre_header
      _
    $region3: #{tpu_custom_call.1} parent=1 // loop_header
      %s23 = sphi 0, %s27
      %p24 = scmp.ge.s32.totalorder %s23, 4
      %s30 = sphi 0, %s49
      %s31 = sphi 0, %s45
      %s32 = sphi 0, %s41
      %s33 = sphi 0, %s30
      %s34 = sphi 0, %s31
      %s35 = sphi 0, %s32
      %s36 = sphi 0, %s33
      %s37 = sphi 0, %s34
      %s38 = sphi 0, %s35
      %s54 = sphi 0, %s56
      %s57 = sphi 0, %s54
      %s58 = sphi 0, %s57
      %s74 = sphi 0, %s58
      %s78 = sphi 0, %s78
      %s80 = sphi 0, %s78
      %s81 = sphi 0, %s80
      %s95 = sphi 0, %s81
      %s99 = sphi 0, %s99
      %s101 = sphi 0, %s99
      %s102 = sphi 0, %s101
      %s116 = sphi 0, %s102
      %s120 = sphi 0, %s120
      %s122 = sphi 0, %s120
      %s123 = sphi 0, %s122
      %s137 = sphi 0, %s123
      %s141 = sphi 0, %s141
      %s143 = sphi 0, %s141
      %s144 = sphi 0, %s143
      %s158 = sphi 0, %s144
      %s162 = sphi 0, %s162
      %s164 = sphi 0, %s162
      %s165 = sphi 0, %s164
      %s179 = sphi 0, %s165
      %s183 = sphi 0, %s183
      %s185 = sphi 0, %s183
      %s186 = sphi 0, %s185
      %s200 = sphi 0, %s186
      %s204 = sphi 0, %s204
      %s206 = sphi 0, %s204
      %s207 = sphi 0, %s206
      %s221 = sphi 0, %s207
      %s225 = sphi 0, %s225
      %s227 = sphi 0, %s225
      %s228 = sphi 0, %s227
      %s242 = sphi 0, %s228
      %s250 = sphi 0, %s252
      %s253 = sphi 0, %s250
      %s254 = sphi 0, %s253
      %s270 = sphi 0, %s254
    $region4: #{tpu_custom_call.1} parent=1 // loop_header_branch
      %26 = sbr.rel (%p24) target = $region8
    $region5: #{tpu_custom_call.1} parent=1 // loop_body
      %s28 = ssub.s32 %s23, 1
      %s29 = ssub.s32 %s23, 2
      %s39 = sadd.s32 1, %s32
      %p40 = scmp.ge.s32.totalorder %s39, 1
      %s41 = scalar_select %p40, 0, %s39
      %s42 = sadd.s32 1, %s31
      %s43 = scalar_select %p40, %s42, %s31
      %p44 = scmp.ge.s32.totalorder %s43, 1
      %s45 = scalar_select %p44, 0, %s43
      %s46 = sadd.s32 1, %s30
      %s47 = scalar_select %p44, %s46, %s30
      %p48 = scmp.ge.s32.totalorder %s47, 2
      %s49 = scalar_select %p48, 0, %s47
      %s50 = ssub.s32 %s30, %s49
      %s51 = ssub.s32 %s31, %s45
      %s52 = sor.u32 %s50, %s51
      %p53 = scmp.eq.s32.totalorder %s52, 0
      %s55 = sadd.s32 %s54, 1
      %s56 = scalar_select %p53, %s54, %s55
      %p59 = pneg %p53
      %p60 = scmp.eq.s32.totalorder %s23, 1
      %p61 = por %p59, %p60
      %p62 = scmp.ne.s32.totalorder %s54, %s57
      %p63 = scmp.eq.s32.totalorder %s23, 0
      %p64 = por %p62, %p63
      %p65 = scmp.ne.s32.totalorder %s54, %s57
      %p66 = scmp.eq.s32.totalorder %s28, 1
      %p67 = por %p65, %p66
      %p68 = scmp.ne.s32.totalorder %s57, %s58
      %p69 = scmp.eq.s32.totalorder %s28, 0
      %p70 = por %p68, %p69
      %p71 = scmp.ne.s32.totalorder %s57, %s58
      %p72 = scmp.eq.s32.totalorder %s29, 1
      %p73 = por %p71, %p72
      %p75 = scmp.ne.s32.totalorder %s58, %s74
      %p76 = scmp.eq.s32.totalorder %s29, 0
      %p77 = por %p75, %p76
      %s79 = sadd.s32 %s78, 1
      %p82 = scmp.eq.s32.totalorder %s23, 1
      %p83 = scmp.ne.s32.totalorder %s78, %s80
      %p84 = scmp.eq.s32.totalorder %s23, 0
      %p85 = por %p83, %p84
      %p86 = scmp.ne.s32.totalorder %s78, %s80
      %p87 = scmp.eq.s32.totalorder %s28, 1
      %p88 = por %p86, %p87
      %p89 = scmp.ne.s32.totalorder %s80, %s81
      %p90 = scmp.eq.s32.totalorder %s28, 0
      %p91 = por %p89, %p90
      %p92 = scmp.ne.s32.totalorder %s80, %s81
      %p93 = scmp.eq.s32.totalorder %s29, 1
      %p94 = por %p92, %p93
      %p96 = scmp.ne.s32.totalorder %s81, %s95
      %p97 = scmp.eq.s32.totalorder %s29, 0
      %p98 = por %p96, %p97
      %s100 = sadd.s32 %s99, 1
      %p103 = scmp.eq.s32.totalorder %s23, 1
      %p104 = scmp.ne.s32.totalorder %s99, %s101
      %p105 = scmp.eq.s32.totalorder %s23, 0
      %p106 = por %p104, %p105
      %p107 = scmp.ne.s32.totalorder %s99, %s101
      %p108 = scmp.eq.s32.totalorder %s28, 1
      %p109 = por %p107, %p108
      %p110 = scmp.ne.s32.totalorder %s101, %s102
      %p111 = scmp.eq.s32.totalorder %s28, 0
      %p112 = por %p110, %p111
      %p113 = scmp.ne.s32.totalorder %s101, %s102
      %p114 = scmp.eq.s32.totalorder %s29, 1
      %p115 = por %p113, %p114
      %p117 = scmp.ne.s32.totalorder %s102, %s116
      %p118 = scmp.eq.s32.totalorder %s29, 0
      %p119 = por %p117, %p118
      %s121 = sadd.s32 %s120, 1
      %p124 = scmp.eq.s32.totalorder %s23, 1
      %p125 = scmp.ne.s32.totalorder %s120, %s122
      %p126 = scmp.eq.s32.totalorder %s23, 0
      %p127 = por %p125, %p126
      %p128 = scmp.ne.s32.totalorder %s120, %s122
      %p129 = scmp.eq.s32.totalorder %s28, 1
      %p130 = por %p128, %p129
      %p131 = scmp.ne.s32.totalorder %s122, %s123
      %p132 = scmp.eq.s32.totalorder %s28, 0
      %p133 = por %p131, %p132
      %p134 = scmp.ne.s32.totalorder %s122, %s123
      %p135 = scmp.eq.s32.totalorder %s29, 1
      %p136 = por %p134, %p135
      %p138 = scmp.ne.s32.totalorder %s123, %s137
      %p139 = scmp.eq.s32.totalorder %s29, 0
      %p140 = por %p138, %p139
      %s142 = sadd.s32 %s141, 1
      %p145 = scmp.eq.s32.totalorder %s23, 1
      %p146 = scmp.ne.s32.totalorder %s141, %s143
      %p147 = scmp.eq.s32.totalorder %s23, 0
      %p148 = por %p146, %p147
      %p149 = scmp.ne.s32.totalorder %s141, %s143
      %p150 = scmp.eq.s32.totalorder %s28, 1
      %p151 = por %p149, %p150
      %p152 = scmp.ne.s32.totalorder %s143, %s144
      %p153 = scmp.eq.s32.totalorder %s28, 0
      %p154 = por %p152, %p153
      %p155 = scmp.ne.s32.totalorder %s143, %s144
      %p156 = scmp.eq.s32.totalorder %s29, 1
      %p157 = por %p155, %p156
      %p159 = scmp.ne.s32.totalorder %s144, %s158
      %p160 = scmp.eq.s32.totalorder %s29, 0
      %p161 = por %p159, %p160
      %s163 = sadd.s32 %s162, 1
      %p166 = scmp.eq.s32.totalorder %s23, 1
      %p167 = scmp.ne.s32.totalorder %s162, %s164
      %p168 = scmp.eq.s32.totalorder %s23, 0
      %p169 = por %p167, %p168
      %p170 = scmp.ne.s32.totalorder %s162, %s164
      %p171 = scmp.eq.s32.totalorder %s28, 1
      %p172 = por %p170, %p171
      %p173 = scmp.ne.s32.totalorder %s164, %s165
      %p174 = scmp.eq.s32.totalorder %s28, 0
      %p175 = por %p173, %p174
      %p176 = scmp.ne.s32.totalorder %s164, %s165
      %p177 = scmp.eq.s32.totalorder %s29, 1
      %p178 = por %p176, %p177
      %p180 = scmp.ne.s32.totalorder %s165, %s179
      %p181 = scmp.eq.s32.totalorder %s29, 0
      %p182 = por %p180, %p181
      %s184 = sadd.s32 %s183, 1
      %p187 = scmp.eq.s32.totalorder %s23, 1
      %p188 = scmp.ne.s32.totalorder %s183, %s185
      %p189 = scmp.eq.s32.totalorder %s23, 0
      %p190 = por %p188, %p189
      %p191 = scmp.ne.s32.totalorder %s183, %s185
      %p192 = scmp.eq.s32.totalorder %s28, 1
      %p193 = por %p191, %p192
      %p194 = scmp.ne.s32.totalorder %s185, %s186
      %p195 = scmp.eq.s32.totalorder %s28, 0
      %p196 = por %p194, %p195
      %p197 = scmp.ne.s32.totalorder %s185, %s186
      %p198 = scmp.eq.s32.totalorder %s29, 1
      %p199 = por %p197, %p198
      %p201 = scmp.ne.s32.totalorder %s186, %s200
      %p202 = scmp.eq.s32.totalorder %s29, 0
      %p203 = por %p201, %p202
      %s205 = sadd.s32 %s204, 1
      %p208 = scmp.eq.s32.totalorder %s23, 1
      %p209 = scmp.ne.s32.totalorder %s204, %s206
      %p210 = scmp.eq.s32.totalorder %s23, 0
      %p211 = por %p209, %p210
      %p212 = scmp.ne.s32.totalorder %s204, %s206
      %p213 = scmp.eq.s32.totalorder %s28, 1
      %p214 = por %p212, %p213
      %p215 = scmp.ne.s32.totalorder %s206, %s207
      %p216 = scmp.eq.s32.totalorder %s28, 0
      %p217 = por %p215, %p216
      %p218 = scmp.ne.s32.totalorder %s206, %s207
      %p219 = scmp.eq.s32.totalorder %s29, 1
      %p220 = por %p218, %p219
      %p222 = scmp.ne.s32.totalorder %s207, %s221
      %p223 = scmp.eq.s32.totalorder %s29, 0
      %p224 = por %p222, %p223
      %s226 = sadd.s32 %s225, 1
      %p229 = scmp.eq.s32.totalorder %s23, 1
      %p230 = scmp.ne.s32.totalorder %s225, %s227
      %p231 = scmp.eq.s32.totalorder %s23, 0
      %p232 = por %p230, %p231
      %p233 = scmp.ne.s32.totalorder %s225, %s227
      %p234 = scmp.eq.s32.totalorder %s28, 1
      %p235 = por %p233, %p234
      %p236 = scmp.ne.s32.totalorder %s227, %s228
      %p237 = scmp.eq.s32.totalorder %s28, 0
      %p238 = por %p236, %p237
      %p239 = scmp.ne.s32.totalorder %s227, %s228
      %p240 = scmp.eq.s32.totalorder %s29, 1
      %p241 = por %p239, %p240
      %p243 = scmp.ne.s32.totalorder %s228, %s242
      %p244 = scmp.eq.s32.totalorder %s29, 0
      %p245 = por %p243, %p244
      %s246 = ssub.s32 %s30, %s49
      %s247 = ssub.s32 %s31, %s45
      %s248 = sor.u32 %s246, %s247
      %p249 = scmp.eq.s32.totalorder %s248, 0
      %s251 = sadd.s32 %s250, 1
      %s252 = scalar_select %p249, %s250, %s251
      %p255 = pneg %p249
      %p256 = scmp.eq.s32.totalorder %s23, 1
      %p257 = por %p255, %p256
      %p258 = scmp.ne.s32.totalorder %s250, %s253
      %p259 = scmp.eq.s32.totalorder %s23, 0
      %p260 = por %p258, %p259
      %p261 = scmp.ne.s32.totalorder %s250, %s253
      %p262 = scmp.eq.s32.totalorder %s28, 1
      %p263 = por %p261, %p262
      %p264 = scmp.ne.s32.totalorder %s253, %s254
      %p265 = scmp.eq.s32.totalorder %s28, 0
      %p266 = por %p264, %p265
      %p267 = scmp.ne.s32.totalorder %s253, %s254
      %p268 = scmp.eq.s32.totalorder %s29, 1
      %p269 = por %p267, %p268
      %p271 = scmp.ne.s32.totalorder %s254, %s270
      %p272 = scmp.eq.s32.totalorder %s29, 0
      %p273 = por %p271, %p272
      %p274 = scmp.le.s32.totalorder 1, %s23
      %p275 = scmp.lt.s32.totalorder %s23, 3
      %p276 = pnand %p274, %p275
      %p277 = pneg %p276
      // Predicated region
      $region9: #{tpu_custom_call.1} parent=5 // pred_check
        _
      $region10: #{tpu_custom_call.1} parent=5 // pred_check_branch
        %279 = sbr.rel (%p276) target = $region12
      $region11: #{tpu_custom_call.1} parent=5 // pred_region
        %s280 = ssub.s32 %s23, 1
        // Predicated region
        $region13: #{tpu_custom_call.1} parent=11 // pred_check
          %p281 = pneg %p91
        $region14: #{tpu_custom_call.1} parent=11 // pred_check_branch
          %283 = sbr.rel (%p281) target = $region16
        $region15: #{tpu_custom_call.1} parent=11 // pred_region
          %285 = vsyncadd [#allocation10], 0
          %s286 = sshll.u32 %s1, 4
          %s287 = int_to_ptr.hbm [resolvable:$true] %s286
          %s288 = sshll.u32 [#allocation9], 4
          %s289 = int_to_ptr.vmem [resolvable:$true] %s288
          %294 = dma.hbm_to_vmem [thread:$0]  %s287, 256, %s289, [#allocation10], 64, 64, 4
        $region16: #{tpu_custom_call.1} parent=11 // pred_fallthru
          _
        // Predicated region
        $region17: #{tpu_custom_call.1} parent=11 // pred_check
          %p295 = pneg %p112
        $region18: #{tpu_custom_call.1} parent=11 // pred_check_branch
          %297 = sbr.rel (%p295) target = $region20
        $region19: #{tpu_custom_call.1} parent=11 // pred_region
          %299 = vsyncadd [#allocation10], 0
          %s300 = sshll.u32 %s2, 4
          %s301 = int_to_ptr.hbm [resolvable:$true] %s300
          %s302 = sshll.u32 [#allocation11], 4
          %s303 = int_to_ptr.vmem [resolvable:$true] %s302
          %308 = dma.hbm_to_vmem [thread:$0]  %s301, 256, %s303, [#allocation10], 64, 64, 4
        $region20: #{tpu_custom_call.1} parent=11 // pred_fallthru
          _
        // Predicated region
        $region21: #{tpu_custom_call.1} parent=11 // pred_check
          %p309 = pneg %p133
        $region22: #{tpu_custom_call.1} parent=11 // pred_check_branch
          %311 = sbr.rel (%p309) target = $region24
        $region23: #{tpu_custom_call.1} parent=11 // pred_region
          _
        $region24: #{tpu_custom_call.1} parent=11 // pred_fallthru
          _
        // Predicated region
        $region25: #{tpu_custom_call.1} parent=11 // pred_check
          %p312 = pneg %p154
        $region26: #{tpu_custom_call.1} parent=11 // pred_check_branch
          %314 = sbr.rel (%p312) target = $region28
        $region27: #{tpu_custom_call.1} parent=11 // pred_region
          _
        $region28: #{tpu_custom_call.1} parent=11 // pred_fallthru
          _
        // Predicated region
        $region29: #{tpu_custom_call.1} parent=11 // pred_check
          %p315 = pneg %p175
        $region30: #{tpu_custom_call.1} parent=11 // pred_check_branch
          %317 = sbr.rel (%p315) target = $region32
        $region31: #{tpu_custom_call.1} parent=11 // pred_region
          %319 = vsyncadd [#allocation13], 0
          %s320 = sshll.u32 %s5, 4
          %s321 = int_to_ptr.hbm [resolvable:$true] %s320
          %s322 = sshll.u32 [#allocation12], 4
          %s323 = int_to_ptr.vmem [resolvable:$true] %s322
          %328 = dma.hbm_to_vmem [thread:$0]  %s321, 256, %s323, [#allocation13], 64, 64, 4
        $region32: #{tpu_custom_call.1} parent=11 // pred_fallthru
          _
        // Predicated region
        $region33: #{tpu_custom_call.1} parent=11 // pred_check
          %p329 = pneg %p196
        $region34: #{tpu_custom_call.1} parent=11 // pred_check_branch
          %331 = sbr.rel (%p329) target = $region36
        $region35: #{tpu_custom_call.1} parent=11 // pred_region
          _
        $region36: #{tpu_custom_call.1} parent=11 // pred_fallthru
          _
        // Predicated region
        $region37: #{tpu_custom_call.1} parent=11 // pred_check
          %p332 = pneg %p217
        $region38: #{tpu_custom_call.1} parent=11 // pred_check_branch
          %334 = sbr.rel (%p332) target = $region40
        $region39: #{tpu_custom_call.1} parent=11 // pred_region
          _
        $region40: #{tpu_custom_call.1} parent=11 // pred_fallthru
          _
        // Predicated region
        $region41: #{tpu_custom_call.1} parent=11 // pred_check
          %p335 = pneg %p238
        $region42: #{tpu_custom_call.1} parent=11 // pred_check_branch
          %337 = sbr.rel (%p335) target = $region44
        $region43: #{tpu_custom_call.1} parent=11 // pred_region
          _
        $region44: #{tpu_custom_call.1} parent=11 // pred_fallthru
          _
      $region12: #{tpu_custom_call.1} parent=5 // pred_fallthru
        _
      %p338 = scmp.lt.s32.totalorder %s23, 2
      // Predicated region
      $region45: #{tpu_custom_call.1} parent=5 // pred_check
        %p339 = pneg %p338
      $region46: #{tpu_custom_call.1} parent=5 // pred_check_branch
        %341 = sbr.rel (%p339) target = $region48
      $region47: #{tpu_custom_call.1} parent=5 // pred_region
        // Predicated region
        $region49: #{tpu_custom_call.1} parent=47 // pred_check
          %p342 = pneg %p64
        $region50: #{tpu_custom_call.1} parent=47 // pred_check_branch
          %344 = sbr.rel (%p342) target = $region52
        $region51: #{tpu_custom_call.1} parent=47 // pred_region
          %s345 = sand.u32 %s54, 1
          %s346 = scalar_lea.sflag [#allocation7], %s345
          %s347 = sand.u32 %s54, 1
          %s348 = smul.addr %s347, 8
          %s349 = scalar_lea.vmem [#allocation6], %s348
          %351 = vsyncadd %s346, 0
          %s352 = sadd.s32 %s31, %s30
          %s353 = smul.addr %s352, 8
          %s354 = scalar_lea.hbm %s0, %s353
          %s356 = sshll.u32 %s354, 4
          %s357 = int_to_ptr.hbm [resolvable:$true] %s356
          %s358 = sshll.u32 %s349, 4
          %s359 = int_to_ptr.vmem [resolvable:$true] %s358
          %361 = dma.hbm_to_vmem [thread:$0]  %s357, 128, %s359, %s346
        $region52: #{tpu_custom_call.1} parent=47 // pred_fallthru
          _
      $region48: #{tpu_custom_call.1} parent=5 // pred_fallthru
        _
      %p362 = scmp.le.s32.totalorder 1, %s23
      %p363 = scmp.lt.s32.totalorder %s23, 3
      %p364 = pnand %p362, %p363
      %p365 = pneg %p364
      // Predicated region
      $region53: #{tpu_custom_call.1} parent=5 // pred_check
        _
      $region54: #{tpu_custom_call.1} parent=5 // pred_check_branch
        %367 = sbr.rel (%p364) target = $region56
      $region55: #{tpu_custom_call.1} parent=5 // pred_region
        %s368 = ssub.s32 %s23, 1
        %s369 = sand.u32 %s57, 1
        %s370 = scalar_lea.sflag [#allocation7], %s369
        %s371 = sand.u32 %s57, 1
        %s372 = smul.addr %s371, 8
        %s373 = scalar_lea.vmem [#allocation6], %s372
        // Predicated region
        $region57: #{tpu_custom_call.1} parent=55 // pred_check
          %p374 = pneg %p70
        $region58: #{tpu_custom_call.1} parent=55 // pred_check_branch
          %376 = sbr.rel (%p374) target = $region60
        $region59: #{tpu_custom_call.1} parent=55 // pred_region
          %378 = dma.done %s370, 128
        $region60: #{tpu_custom_call.1} parent=55 // pred_fallthru
          _
        // Predicated region
        $region61: #{tpu_custom_call.1} parent=55 // pred_check
          %p379 = pneg %p91
        $region62: #{tpu_custom_call.1} parent=55 // pred_check_branch
          %381 = sbr.rel (%p379) target = $region64
        $region63: #{tpu_custom_call.1} parent=55 // pred_region
          %383 = dma.done [#allocation10], 256
        $region64: #{tpu_custom_call.1} parent=55 // pred_fallthru
          _
        // Predicated region
        $region65: #{tpu_custom_call.1} parent=55 // pred_check
          %p384 = pneg %p112
        $region66: #{tpu_custom_call.1} parent=55 // pred_check_branch
          %386 = sbr.rel (%p384) target = $region68
        $region67: #{tpu_custom_call.1} parent=55 // pred_region
          %388 = dma.done [#allocation10], 256
        $region68: #{tpu_custom_call.1} parent=55 // pred_fallthru
          _
        // Predicated region
        $region69: #{tpu_custom_call.1} parent=55 // pred_check
          %p389 = pneg %p175
        $region70: #{tpu_custom_call.1} parent=55 // pred_check_branch
          %391 = sbr.rel (%p389) target = $region72
        $region71: #{tpu_custom_call.1} parent=55 // pred_region
          %393 = dma.done [#allocation13], 256
        $region72: #{tpu_custom_call.1} parent=55 // pred_fallthru
          _
        %s394 = sand.u32 %s57, 1
        %s395 = scalar_lea.sflag [#allocation7], %s394
        %s396 = sand.u32 %s57, 1
        %s397 = smul.addr %s396, 8
        %s398 = scalar_lea.vmem [#allocation6], %s397
        %p399 = pneg %p70
        %p400 = pneg %p67
        %p401 = pneg %p91
        %p402 = pneg %p88
        %p403 = pneg %p112
        %p404 = pneg %p109
        %p405 = pneg %p133
        %p406 = pneg %p130
        %p407 = pneg %p154
        %p408 = pneg %p151
        %p409 = pneg %p175
        %p410 = pneg %p172
        %p411 = pneg %p196
        %p412 = pneg %p193
        %p413 = pneg %p217
        %p414 = pneg %p214
        %p415 = pneg %p238
        %p416 = pneg %p235
        %p417 = pneg %p266
        %p418 = pneg %p263
        %s419 = sand.u32 %s253, 1
        %s420 = scalar_lea.sflag [#allocation8], %s419
        %s421 = sand.u32 %s253, 1
        %s422 = smul.addr %s421, 8
        %s423 = scalar_lea.vmem [#allocation14], %s422
        %v425 = vld [vmem:[%s7] sm:$0x1]
        %v426 = vld [vmem:[%s8] sm:$0x1]
        %v427 = vld [vmem:[%s373] sm:$0xff]
        %vm428 = vcmask 261120
        %v429 = vsel %vm428, %v427, 0.0
        %430 = vadd.xlane.f32.xlu0 %v429
        %v431 = vpop.xlane.xlu0 %430
        %v432 = vrcp.pop 32.0
        %v433 = vmul.f32 32.0, %v432
        %v434 = vsub.f32 1.0, %v433
        %v435 = vmul.f32 %v432, %v434
        %v436 = vadd.f32 %v432, %v435
        %vm437 = vweird.f32 %v432
        %v438 = vsel %vm437, %v432, %v436
        %v439 = vmul.f32 %v431, %v438
        %v440 = vsub.f32 %v427, %v439
        %v441 = vmul.f32 %v440, %v440
        %v442 = vsel %vm428, %v441, 0.0
        %443 = vadd.xlane.f32.xlu0 %v442
        %v444 = vpop.xlane.xlu0 %443
        %v445 = vmul.f32 %v444, %v438
        %v446 = vadd.f32 %v445, 1e-05
        %v447 = vrsqrt.pop %v446
        %v448 = vmul.f32 %v447, %v446
        %v449 = vmul.f32 %v448, %v447
        %v450 = vmul.f32 0.5, %v449
        %v451 = vsub.f32 1.5, %v450
        %v452 = vmul.f32 %v447, %v451
        %vm453 = vweird.f32 %v446
        %vm454 = vweird.f32 %v447
        %vm455 = vmor %vm453, %vm454
        %v456 = vsel %vm455, %v447, %v452
        %v457 = vmul.f32 %v440, %v456
        %v459 = vperm.slane %v425, 0
        %v461 = vmul.f32 %v457, %v459
        %v463 = vperm.slane %v426, 0
        %v465 = vadd.f32 %v461, %v463
        %v466 = vpack.c.bf16 %v465, %v465
        %p467 = scmp.eq.s32.totalorder %s35, 0
        // Predicated region
        $region73: #{tpu_custom_call.1} parent=55 // pred_check
          %p468 = pneg %p467
        $region74: #{tpu_custom_call.1} parent=55 // pred_check_branch
          %470 = sbr.rel (%p468) target = $region76
        $region75: #{tpu_custom_call.1} parent=55 // pred_region
          %vm471 = vcmask 7168
          %472 = vst.msk [vmem:[#allocation3] sm:$0xff] %vm471, -1e+30
          %473 = vst.msk [vmem:[#allocation3 + $0x8] sm:$0xff] %vm471, -1e+30
          %474 = vst.msk [vmem:[#allocation3 + $0x10] sm:$0xff] %vm471, -1e+30
          %475 = vst.msk [vmem:[#allocation3 + $0x18] sm:$0xff] %vm471, -1e+30
          %476 = vst.msk [vmem:[#allocation4] sm:$0xff] %vm471, 0.0
          %477 = vst.msk [vmem:[#allocation4 + $0x8] sm:$0xff] %vm471, 0.0
          %478 = vst.msk [vmem:[#allocation4 + $0x10] sm:$0xff] %vm471, 0.0
          %479 = vst.msk [vmem:[#allocation4 + $0x18] sm:$0xff] %vm471, 0.0
          %vm480 = vcmask 64512
          %481 = vst.msk [vmem:[#allocation5] sm:$0xff] %vm480, 0.0
          %482 = vst.msk [vmem:[#allocation5 + $0x8] sm:$0xff] %vm480, 0.0
          %483 = vst.msk [vmem:[#allocation5 + $0x10] sm:$0xff] %vm480, 0.0
          %484 = vst.msk [vmem:[#allocation5 + $0x18] sm:$0xff] %vm480, 0.0
          %v485 = vld [vmem:[#allocation9] sm:$0xf]
          %v486 = vld [vmem:[#allocation9 + $0x4] sm:$0xf]
          %v487 = vld [vmem:[#allocation9 + $0x8] sm:$0xf]
          %v488 = vld [vmem:[#allocation9 + $0xc] sm:$0xf]
          %v489 = vld [vmem:[%s3] sm:$0x1]
          %v491 = vperm.slane %v489, 0
          %v497 = vunpack.c.l.b16 %v485
          %v498 = vunpack.c.l.b16 %v486
          %v499 = vunpack.c.l.b16 %v487
          %v500 = vunpack.c.l.b16 %v488
          %v501 = vpack.c.b16 %v498, %v497
          %v502 = vpack.c.b16 %v500, %v499
          %v506 = vsel %vm428, %v466, 0
          %508 = vmatpush.bf16.msra.mxu0 0
          %509 = vmatpush.bf16.msra.mxu0 0
          %510 = vmatpush.bf16.msra.mxu0 0
          %511 = vmatpush.bf16.msra.mxu0 0
          %512 = vmatpush.bf16.msra.mxu0 0
          %513 = vmatpush.bf16.msra.mxu0 0
          %514 = vmatpush.bf16.msra.mxu0 %v502
          %515 = vmatpush.bf16.msra.mxu0 %v501
          %516 = vmatmul.bf16.gmra.mxu0 %v506
          %v517 = vpop.f32.mrf.mxu0
          %v518 = vadd.f32 %v491, %v517
          %v519 = vpop.f32.mrf.mxu0
          %520 = vdwg.mxu0
          %v521 = vpack.c.bf16 %v518, %v518
          %523 = vrot.lane.b32.xlu0 %v521, 120
          %v524 = vpop.permute.xlu0 %523
          %526 = vrot.lane.b32.xlu0 %v521, 112
          %v527 = vpop.permute.xlu0 %526
          %529 = vrot.lane.b32.xlu0 %v521, 104
          %v530 = vpop.permute.xlu0 %529
          %vm532 = vcmask 60416
          %533 = vst.msk [vmem:[#allocation2] sm:$0xf] %vm532, %v521
          %534 = vst.msk [vmem:[#allocation2 + $0x4] sm:$0xf] %vm532, %v524
          %535 = vst.msk [vmem:[#allocation2 + $0x8] sm:$0xf] %vm532, %v527
          %536 = vst.msk [vmem:[#allocation2 + $0xc] sm:$0xf] %vm532, %v530
        $region76: #{tpu_custom_call.1} parent=55 // pred_fallthru
          _
        %s537 = smul.u32 %s34, 8
        %s538 = smul.u32 %s35, 8
        %s539 = sadd.s32 %s537, 7
        %p540 = scmp.le.s32.totalorder %s538, %s539
        // Predicated region
        $region77: #{tpu_custom_call.1} parent=55 // pred_check
          %p541 = pneg %p540
        $region78: #{tpu_custom_call.1} parent=55 // pred_check_branch
          %543 = sbr.rel (%p541) target = $region80
        $region79: #{tpu_custom_call.1} parent=55 // pred_region
          %v544 = vld [vmem:[#allocation11] sm:$0xf]
          %v545 = vld [vmem:[#allocation11 + $0x4] sm:$0xf]
          %v546 = vld [vmem:[#allocation11 + $0x8] sm:$0xf]
          %v547 = vld [vmem:[#allocation11 + $0xc] sm:$0xf]
          %v548 = vld [vmem:[%s4] sm:$0x1]
          %v550 = vperm.slane %v548, 0
          %v556 = vunpack.c.l.b16 %v544
          %v557 = vunpack.c.l.b16 %v545
          %v558 = vunpack.c.l.b16 %v546
          %v559 = vunpack.c.l.b16 %v547
          %v560 = vpack.c.b16 %v557, %v556
          %v561 = vpack.c.b16 %v559, %v558
          %v565 = vsel %vm428, %v466, 0
          %567 = vmatpush.bf16.msra.mxu0 0
          %568 = vmatpush.bf16.msra.mxu0 0
          %569 = vmatpush.bf16.msra.mxu0 0
          %570 = vmatpush.bf16.msra.mxu0 0
          %571 = vmatpush.bf16.msra.mxu0 0
          %572 = vmatpush.bf16.msra.mxu0 0
          %573 = vmatpush.bf16.msra.mxu0 %v561
          %574 = vmatpush.bf16.msra.mxu0 %v560
          %575 = vmatmul.bf16.gmra.mxu0 %v565
          %v576 = vpop.f32.mrf.mxu0
          %v577 = vadd.f32 %v550, %v576
          %v578 = vpop.f32.mrf.mxu0
          %579 = vdwg.mxu0
          %v580 = vpack.c.bf16 %v577, %v577
          %582 = vrot.lane.b32.xlu0 %v580, 120
          %v583 = vpop.permute.xlu0 %582
          %584 = vrot.lane.b32.xlu0 %v580, 112
          %v585 = vpop.permute.xlu0 %584
          %586 = vrot.lane.b32.xlu0 %v580, 104
          %v587 = vpop.permute.xlu0 %586
          %v588 = vld [vmem:[#allocation2] sm:$0xf]
          %v589 = vld [vmem:[#allocation2 + $0x4] sm:$0xf]
          %v590 = vld [vmem:[#allocation2 + $0x8] sm:$0xf]
          %v591 = vld [vmem:[#allocation2 + $0xc] sm:$0xf]
          %vm592 = vcmask 64512
          %v594 = vsel %vm592, %v588, 0
          %v597 = vsel %vm592, %v580, 0
          %599 = vmatpush.bf16.xpose.msra.mxu0 0
          %600 = vmatpush.bf16.xpose.msra.mxu0 0
          %601 = vmatpush.bf16.xpose.msra.mxu0 0
          %602 = vmatpush.bf16.xpose.msra.mxu0 0
          %603 = vmatpush.bf16.xpose.msra.mxu0 0
          %604 = vmatpush.bf16.xpose.msra.mxu0 0
          %605 = vmatpush.bf16.xpose.msra.mxu0 0
          %606 = vmatpush.bf16.xpose.msra.mxu0 %v597
          %607 = vmatmul.bf16.gmra.mxu0 %v594
          %v608 = vpop.f32.mrf.mxu0
          %v609 = vadd.f32 0.0, %v608
          %v610 = vpop.f32.mrf.mxu0
          %611 = vdwg.mxu0
          %v613 = vsel %vm592, %v589, 0
          %v616 = vsel %vm592, %v583, 0
          %618 = vmatpush.bf16.xpose.msra.mxu0 0
          %619 = vmatpush.bf16.xpose.msra.mxu0 0
          %620 = vmatpush.bf16.xpose.msra.mxu0 0
          %621 = vmatpush.bf16.xpose.msra.mxu0 0
          %622 = vmatpush.bf16.xpose.msra.mxu0 0
          %623 = vmatpush.bf16.xpose.msra.mxu0 0
          %624 = vmatpush.bf16.xpose.msra.mxu0 0
          %625 = vmatpush.bf16.xpose.msra.mxu0 %v616
          %626 = vmatmul.bf16.gmra.mxu0 %v613
          %v627 = vpop.f32.mrf.mxu0
          %v628 = vadd.f32 0.0, %v627
          %v629 = vpop.f32.mrf.mxu0
          %630 = vdwg.mxu0
          %v632 = vsel %vm592, %v590, 0
          %v635 = vsel %vm592, %v585, 0
          %637 = vmatpush.bf16.xpose.msra.mxu0 0
          %638 = vmatpush.bf16.xpose.msra.mxu0 0
          %639 = vmatpush.bf16.xpose.msra.mxu0 0
          %640 = vmatpush.bf16.xpose.msra.mxu0 0
          %641 = vmatpush.bf16.xpose.msra.mxu0 0
          %642 = vmatpush.bf16.xpose.msra.mxu0 0
          %643 = vmatpush.bf16.xpose.msra.mxu0 0
          %644 = vmatpush.bf16.xpose.msra.mxu0 %v635
          %645 = vmatmul.bf16.gmra.mxu0 %v632
          %v646 = vpop.f32.mrf.mxu0
          %v647 = vadd.f32 0.0, %v646
          %v648 = vpop.f32.mrf.mxu0
          %649 = vdwg.mxu0
          %v651 = vsel %vm592, %v591, 0
          %v654 = vsel %vm592, %v587, 0
          %656 = vmatpush.bf16.xpose.msra.mxu0 0
          %657 = vmatpush.bf16.xpose.msra.mxu0 0
          %658 = vmatpush.bf16.xpose.msra.mxu0 0
          %659 = vmatpush.bf16.xpose.msra.mxu0 0
          %660 = vmatpush.bf16.xpose.msra.mxu0 0
          %661 = vmatpush.bf16.xpose.msra.mxu0 0
          %662 = vmatpush.bf16.xpose.msra.mxu0 0
          %663 = vmatpush.bf16.xpose.msra.mxu0 %v654
          %664 = vmatmul.bf16.gmra.mxu0 %v651
          %v665 = vpop.f32.mrf.mxu0
          %v666 = vadd.f32 0.0, %v665
          %v667 = vpop.f32.mrf.mxu0
          %668 = vdwg.mxu0
          %v669 = vlaneseq
          %v670 = vshrl.u32 %v669, 7
          %v671 = vstv %s537
          %v672 = vadd.s32 %v671, %v670
          %v673 = vlaneseq
          %v674 = vand.u32 %v673, 127
          %v675 = vstv %s538
          %v676 = vadd.s32 %v675, %v674
          %vm677 = vcmp.ge.s32.totalorder %v672, %v676
          %v678 = vsel %vm677, 1, 0
          %vm679 = vcmp.eq.s32.totalorder %v678, 1
          %v680 = vsel %vm679, %v609, -1e+30
          %v681 = vsel %vm679, %v628, -1e+30
          %v682 = vsel %vm679, %v647, -1e+30
          %v683 = vsel %vm679, %v666, -1e+30
          %v684 = vld [vmem:[#allocation3] sm:$0xff]
          %v685 = vld [vmem:[#allocation3 + $0x8] sm:$0xff]
          %v686 = vld [vmem:[#allocation3 + $0x10] sm:$0xff]
          %v687 = vld [vmem:[#allocation3 + $0x18] sm:$0xff]
          %v688 = vsel %vm592, %v680, -inf
          %689 = vmax.xlane.f32.xlu0 %v688
          %v690 = vpop.xlane.xlu0 %689
          %v691 = vsel %vm592, %v681, -inf
          %692 = vmax.xlane.f32.xlu0 %v691
          %v693 = vpop.xlane.xlu0 %692
          %v694 = vsel %vm592, %v682, -inf
          %695 = vmax.xlane.f32.xlu0 %v694
          %v696 = vpop.xlane.xlu0 %695
          %v697 = vsel %vm592, %v683, -inf
          %698 = vmax.xlane.f32.xlu0 %v697
          %v699 = vpop.xlane.xlu0 %698
          %v700 = vmax.f32 %v684, %v690
          %v701 = vmax.f32 %v685, %v693
          %v702 = vmax.f32 %v686, %v696
          %v703 = vmax.f32 %v687, %v699
          %v704 = vsub.f32 %v684, %v700
          %v705 = vsub.f32 %v685, %v701
          %v706 = vsub.f32 %v686, %v702
          %v707 = vsub.f32 %v687, %v703
          %v708 = vmul.f32 %v704, 1.442695
          %v709 = vpow.pop %v708
          %v710 = vmul.f32 %v705, 1.442695
          %v711 = vpow.pop %v710
          %v712 = vmul.f32 %v706, 1.442695
          %v713 = vpow.pop %v712
          %v714 = vmul.f32 %v707, 1.442695
          %v715 = vpow.pop %v714
          %717 = vset.pattern.permute.xlu0 0
          %718 = vperm.xlu0 %717, %v700
          %v719 = vpop.permute.xlu0 %718
          %722 = vset.pattern.permute.xlu0 0
          %723 = vperm.xlu0 %722, %v701
          %v724 = vpop.permute.xlu0 %723
          %727 = vset.pattern.permute.xlu0 0
          %728 = vperm.xlu0 %727, %v702
          %v729 = vpop.permute.xlu0 %728
          %732 = vset.pattern.permute.xlu0 0
          %733 = vperm.xlu0 %732, %v703
          %v734 = vpop.permute.xlu0 %733
          %v736 = vsub.f32 %v680, %v719
          %v737 = vsub.f32 %v681, %v724
          %v738 = vsub.f32 %v682, %v729
          %v739 = vsub.f32 %v683, %v734
          %v740 = vmul.f32 %v736, 1.442695
          %v741 = vpow.pop %v740
          %v742 = vmul.f32 %v737, 1.442695
          %v743 = vpow.pop %v742
          %v744 = vmul.f32 %v738, 1.442695
          %v745 = vpow.pop %v744
          %v746 = vmul.f32 %v739, 1.442695
          %v747 = vpow.pop %v746
          %v748 = vld [vmem:[#allocation4] sm:$0xff]
          %v749 = vld [vmem:[#allocation4 + $0x8] sm:$0xff]
          %v750 = vld [vmem:[#allocation4 + $0x10] sm:$0xff]
          %v751 = vld [vmem:[#allocation4 + $0x18] sm:$0xff]
          %v752 = vmul.f32 %v709, %v748
          %v753 = vmul.f32 %v711, %v749
          %v754 = vmul.f32 %v713, %v750
          %v755 = vmul.f32 %v715, %v751
          %v756 = vsel %vm592, %v741, 0.0
          %757 = vadd.xlane.f32.xlu0 %v756
          %v758 = vpop.xlane.xlu0 %757
          %v759 = vsel %vm592, %v743, 0.0
          %760 = vadd.xlane.f32.xlu0 %v759
          %v761 = vpop.xlane.xlu0 %760
          %v762 = vsel %vm592, %v745, 0.0
          %763 = vadd.xlane.f32.xlu0 %v762
          %v764 = vpop.xlane.xlu0 %763
          %v765 = vsel %vm592, %v747, 0.0
          %766 = vadd.xlane.f32.xlu0 %v765
          %v767 = vpop.xlane.xlu0 %766
          %v768 = vadd.f32 %v752, %v758
          %v769 = vadd.f32 %v753, %v761
          %v770 = vadd.f32 %v754, %v764
          %v771 = vadd.f32 %v755, %v767
          %vm772 = vcmask 7168
          %773 = vst.msk [vmem:[#allocation4] sm:$0xff] %vm772, %v768
          %774 = vst.msk [vmem:[#allocation4 + $0x8] sm:$0xff] %vm772, %v769
          %775 = vst.msk [vmem:[#allocation4 + $0x10] sm:$0xff] %vm772, %v770
          %776 = vst.msk [vmem:[#allocation4 + $0x18] sm:$0xff] %vm772, %v771
          %v777 = vld [vmem:[#allocation5] sm:$0xff]
          %v778 = vld [vmem:[#allocation5 + $0x8] sm:$0xff]
          %v779 = vld [vmem:[#allocation5 + $0x10] sm:$0xff]
          %v780 = vld [vmem:[#allocation5 + $0x18] sm:$0xff]
          %782 = vset.pattern.permute.xlu0 0
          %783 = vperm.xlu0 %782, %v709
          %v784 = vpop.permute.xlu0 %783
          %787 = vset.pattern.permute.xlu0 0
          %788 = vperm.xlu0 %787, %v711
          %v789 = vpop.permute.xlu0 %788
          %792 = vset.pattern.permute.xlu0 0
          %793 = vperm.xlu0 %792, %v713
          %v794 = vpop.permute.xlu0 %793
          %797 = vset.pattern.permute.xlu0 0
          %798 = vperm.xlu0 %797, %v715
          %v799 = vpop.permute.xlu0 %798
          %v801 = vmul.f32 %v784, %v777
          %v802 = vmul.f32 %v789, %v778
          %v803 = vmul.f32 %v794, %v779
          %v804 = vmul.f32 %v799, %v780
          %v805 = vpack.c.bf16 %v741, %v741
          %v806 = vpack.c.bf16 %v743, %v743
          %v807 = vpack.c.bf16 %v745, %v745
          %v808 = vpack.c.bf16 %v747, %v747
          %v809 = vunpack.c.l.b16 %v580
          %v810 = vpack.c.b16 %v809, %v809
          %811 = vrot.lane.b32.xlu0 %v810, 96
          %v812 = vpop.permute.xlu0 %811
          %v814 = vsel %vm592, %v805, 0
          %vm816 = vcmask 1043456
          %v818 = vsel %vm816, %v812, 0
          %820 = vmatpush.bf16.msra.mxu0 0
          %821 = vmatpush.bf16.msra.mxu0 0
          %822 = vmatpush.bf16.msra.mxu0 0
          %823 = vmatpush.bf16.msra.mxu0 0
          %824 = vmatpush.bf16.msra.mxu0 0
          %825 = vmatpush.bf16.msra.mxu0 0
          %826 = vmatpush.bf16.msra.mxu0 0
          %827 = vmatpush.bf16.msra.mxu0 %v818
          %828 = vmatmul.bf16.gmra.mxu0 %v814
          %v829 = vpop.f32.mrf.mxu0
          %v830 = vadd.f32 0.0, %v829
          %v831 = vpop.f32.mrf.mxu0
          %832 = vdwg.mxu0
          %v833 = vunpack.c.l.b16 %v583
          %v834 = vpack.c.b16 %v833, %v833
          %835 = vrot.lane.b32.xlu0 %v834, 96
          %v836 = vpop.permute.xlu0 %835
          %v838 = vsel %vm592, %v806, 0
          %v841 = vsel %vm816, %v836, 0
          %843 = vmatpush.bf16.msra.mxu0 0
          %844 = vmatpush.bf16.msra.mxu0 0
          %845 = vmatpush.bf16.msra.mxu0 0
          %846 = vmatpush.bf16.msra.mxu0 0
          %847 = vmatpush.bf16.msra.mxu0 0
          %848 = vmatpush.bf16.msra.mxu0 0
          %849 = vmatpush.bf16.msra.mxu0 0
          %850 = vmatpush.bf16.msra.mxu0 %v841
          %851 = vmatmul.bf16.gmra.mxu0 %v838
          %v852 = vpop.f32.mrf.mxu0
          %v853 = vadd.f32 0.0, %v852
          %v854 = vpop.f32.mrf.mxu0
          %855 = vdwg.mxu0
          %v856 = vunpack.c.l.b16 %v585
          %v857 = vpack.c.b16 %v856, %v856
          %858 = vrot.lane.b32.xlu0 %v857, 96
          %v859 = vpop.permute.xlu0 %858
          %v861 = vsel %vm592, %v807, 0
          %v864 = vsel %vm816, %v859, 0
          %866 = vmatpush.bf16.msra.mxu0 0
          %867 = vmatpush.bf16.msra.mxu0 0
          %868 = vmatpush.bf16.msra.mxu0 0
          %869 = vmatpush.bf16.msra.mxu0 0
          %870 = vmatpush.bf16.msra.mxu0 0
          %871 = vmatpush.bf16.msra.mxu0 0
          %872 = vmatpush.bf16.msra.mxu0 0
          %873 = vmatpush.bf16.msra.mxu0 %v864
          %874 = vmatmul.bf16.gmra.mxu0 %v861
          %v875 = vpop.f32.mrf.mxu0
          %v876 = vadd.f32 0.0, %v875
          %v877 = vpop.f32.mrf.mxu0
          %878 = vdwg.mxu0
          %v879 = vunpack.c.l.b16 %v587
          %v880 = vpack.c.b16 %v879, %v879
          %881 = vrot.lane.b32.xlu0 %v880, 96
          %v882 = vpop.permute.xlu0 %881
          %v884 = vsel %vm592, %v808, 0
          %v887 = vsel %vm816, %v882, 0
          %889 = vmatpush.bf16.msra.mxu0 0
          %890 = vmatpush.bf16.msra.mxu0 0
          %891 = vmatpush.bf16.msra.mxu0 0
          %892 = vmatpush.bf16.msra.mxu0 0
          %893 = vmatpush.bf16.msra.mxu0 0
          %894 = vmatpush.bf16.msra.mxu0 0
          %895 = vmatpush.bf16.msra.mxu0 0
          %896 = vmatpush.bf16.msra.mxu0 %v887
          %897 = vmatmul.bf16.gmra.mxu0 %v884
          %v898 = vpop.f32.mrf.mxu0
          %v899 = vadd.f32 0.0, %v898
          %v900 = vpop.f32.mrf.mxu0
          %901 = vdwg.mxu0
          %v902 = vadd.f32 %v801, %v830
          %v903 = vadd.f32 %v802, %v853
          %v904 = vadd.f32 %v803, %v876
          %v905 = vadd.f32 %v804, %v899
          %906 = vst.msk [vmem:[#allocation5] sm:$0xff] %vm592, %v902
          %907 = vst.msk [vmem:[#allocation5 + $0x8] sm:$0xff] %vm592, %v903
          %908 = vst.msk [vmem:[#allocation5 + $0x10] sm:$0xff] %vm592, %v904
          %909 = vst.msk [vmem:[#allocation5 + $0x18] sm:$0xff] %vm592, %v905
          %910 = vst.msk [vmem:[#allocation3] sm:$0xff] %vm772, %v700
          %911 = vst.msk [vmem:[#allocation3 + $0x8] sm:$0xff] %vm772, %v701
          %912 = vst.msk [vmem:[#allocation3 + $0x10] sm:$0xff] %vm772, %v702
          %913 = vst.msk [vmem:[#allocation3 + $0x18] sm:$0xff] %vm772, %v703
        $region80: #{tpu_custom_call.1} parent=55 // pred_fallthru
          _
        // Predicated region
        $region81: #{tpu_custom_call.1} parent=55 // pred_check
          %p914 = pneg %p467
        $region82: #{tpu_custom_call.1} parent=55 // pred_check_branch
          %916 = sbr.rel (%p914) target = $region84
        $region83: #{tpu_custom_call.1} parent=55 // pred_region
          %v917 = vld [vmem:[#allocation5] sm:$0xff]
          %v918 = vld [vmem:[#allocation5 + $0x8] sm:$0xff]
          %v919 = vld [vmem:[#allocation5 + $0x10] sm:$0xff]
          %v920 = vld [vmem:[#allocation5 + $0x18] sm:$0xff]
          %v921 = vld [vmem:[#allocation4] sm:$0xff]
          %v922 = vld [vmem:[#allocation4 + $0x8] sm:$0xff]
          %v923 = vld [vmem:[#allocation4 + $0x10] sm:$0xff]
          %v924 = vld [vmem:[#allocation4 + $0x18] sm:$0xff]
          %v925 = vrcp.pop %v921
          %v926 = vrcp.pop %v922
          %v927 = vrcp.pop %v923
          %v928 = vrcp.pop %v924
          %930 = vset.pattern.permute.xlu0 0
          %931 = vperm.xlu0 %930, %v925
          %v932 = vpop.permute.xlu0 %931
          %935 = vset.pattern.permute.xlu0 0
          %936 = vperm.xlu0 %935, %v926
          %v937 = vpop.permute.xlu0 %936
          %940 = vset.pattern.permute.xlu0 0
          %941 = vperm.xlu0 %940, %v927
          %v942 = vpop.permute.xlu0 %941
          %945 = vset.pattern.permute.xlu0 0
          %946 = vperm.xlu0 %945, %v928
          %v947 = vpop.permute.xlu0 %946
          %v949 = vmul.f32 %v917, %v932
          %v950 = vmul.f32 %v918, %v937
          %v951 = vmul.f32 %v919, %v942
          %v952 = vmul.f32 %v920, %v947
          %v953 = vpack.c.bf16 %v949, %v949
          %v954 = vpack.c.bf16 %v950, %v950
          %v955 = vpack.c.bf16 %v951, %v951
          %v956 = vpack.c.bf16 %v952, %v952
          %v958 = vunpack.c.l.b16 %v954
          %v959 = vpack.c.b16 %v958, %v958
          %960 = vrot.lane.b32.xlu0 %v959, 8
          %v961 = vpop.permute.xlu0 %960
          %v963 = vunpack.c.l.b16 %v955
          %v964 = vpack.c.b16 %v963, %v963
          %965 = vrot.lane.b32.xlu0 %v964, 16
          %v966 = vpop.permute.xlu0 %965
          %v968 = vunpack.c.l.b16 %v956
          %v969 = vpack.c.b16 %v968, %v968
          %970 = vrot.lane.b32.xlu0 %v969, 24
          %v971 = vpop.permute.xlu0 %970
          %vm972 = vcmask 64512
          %v975 = vsel %vm972, %v953, %v961
          %vm976 = vcmask 130048
          %v978 = vsel %vm976, %v975, %v966
          %vm979 = vcmask 195584
          %v981 = vsel %vm979, %v978, %v971
          %v982 = vld [vmem:[#allocation12] sm:$0xf]
          %v983 = vld [vmem:[#allocation12 + $0x4] sm:$0xf]
          %v984 = vld [vmem:[#allocation12 + $0x8] sm:$0xf]
          %v985 = vld [vmem:[#allocation12 + $0xc] sm:$0xf]
          %v986 = vld [vmem:[%s6] sm:$0x1]
          %v988 = vperm.slane %v986, 0
          %v994 = vunpack.c.l.b16 %v982
          %v995 = vunpack.c.l.b16 %v983
          %v996 = vunpack.c.l.b16 %v984
          %v997 = vunpack.c.l.b16 %v985
          %v998 = vpack.c.b16 %v995, %v994
          %v999 = vpack.c.b16 %v997, %v996
          %v1002 = vsel %vm428, %v981, 0
          %1004 = vmatpush.bf16.msra.mxu0 0
          %1005 = vmatpush.bf16.msra.mxu0 0
          %1006 = vmatpush.bf16.msra.mxu0 0
          %1007 = vmatpush.bf16.msra.mxu0 0
          %1008 = vmatpush.bf16.msra.mxu0 0
          %1009 = vmatpush.bf16.msra.mxu0 0
          %1010 = vmatpush.bf16.msra.mxu0 %v999
          %1011 = vmatpush.bf16.msra.mxu0 %v998
          %1012 = vmatmul.bf16.gmra.mxu0 %v1002
          %v1013 = vpop.f32.mrf.mxu0
          %v1014 = vadd.f32 %v988, %v1013
          %v1015 = vpop.f32.mrf.mxu0
          %1016 = vdwg.mxu0
          %v1017 = vld [vmem:[%s373] sm:$0xff]
          %v1018 = vadd.f32 %v1014, %v1017
          %1019 = vst.msk [vmem:[%s423] sm:$0xff] %vm428, %v1018
        $region84: #{tpu_custom_call.1} parent=55 // pred_fallthru
          _
        %s1020 = sand.u32 %s253, 1
        %s1021 = scalar_lea.sflag [#allocation8], %s1020
        %s1022 = sand.u32 %s253, 1
        %s1023 = smul.addr %s1022, 8
        %s1024 = scalar_lea.vmem [#allocation14], %s1023
        // Predicated region
        $region85: #{tpu_custom_call.1} parent=55 // pred_check
          %p1025 = pneg %p263
        $region86: #{tpu_custom_call.1} parent=55 // pred_check_branch
          %1027 = sbr.rel (%p1025) target = $region88
        $region87: #{tpu_custom_call.1} parent=55 // pred_region
          %1029 = vsyncadd %s1021, 0
          %s1030 = sadd.s32 %s34, %s33
          %s1031 = smul.addr %s1030, 8
          %s1032 = scalar_lea.hbm %s9, %s1031
          %s1034 = sshll.u32 %s1024, 4
          %s1035 = int_to_ptr.vmem [resolvable:$true] %s1034
          %s1036 = sshll.u32 %s1032, 4
          %s1037 = int_to_ptr.hbm [resolvable:$true] %s1036
          %1039 = dma.vmem_to_hbm [thread:$0]  %s1035, 128, %s1037, %s1021
        $region88: #{tpu_custom_call.1} parent=55 // pred_fallthru
          _
      $region56: #{tpu_custom_call.1} parent=5 // pred_fallthru
        _
      %p1040 = scmp.le.s32.totalorder 2, %s23
      // Predicated region
      $region89: #{tpu_custom_call.1} parent=5 // pred_check
        %p1041 = pneg %p1040
      $region90: #{tpu_custom_call.1} parent=5 // pred_check_branch
        %1043 = sbr.rel (%p1041) target = $region92
      $region91: #{tpu_custom_call.1} parent=5 // pred_region
        %s1044 = ssub.s32 %s23, 2
        // Predicated region
        $region93: #{tpu_custom_call.1} parent=91 // pred_check
          %p1045 = pneg %p269
        $region94: #{tpu_custom_call.1} parent=91 // pred_check_branch
          %1047 = sbr.rel (%p1045) target = $region96
        $region95: #{tpu_custom_call.1} parent=91 // pred_region
          %s1048 = sand.u32 %s254, 1
          %s1049 = scalar_lea.sflag [#allocation8], %s1048
          %s1050 = sand.u32 %s254, 1
          %s1051 = smul.addr %s1050, 8
          %s1052 = scalar_lea.vmem [#allocation14], %s1051
          %1054 = dma.done %s1049, 128
        $region96: #{tpu_custom_call.1} parent=91 // pred_fallthru
          _
      $region92: #{tpu_custom_call.1} parent=5 // pred_fallthru
        _
    $region6: #{tpu_custom_call.1} parent=1 // loop_footer
      %s27 = sadd.s32 1, %s23
    $region7: #{tpu_custom_call.1} parent=1 // loop_footer_branch
      %22 = sbr.rel target = $region3
    $region8: #{tpu_custom_call.1} parent=1 // loop_exit
      _
    %1055 = vsyncpa [#allocation7], 1
    %s1056 = scalar_lea.sflag [#allocation7], 1
    %1057 = vsyncpa %s1056, 1
    %1058 = vsyncpa [#allocation10], 1
    %1059 = vsyncpa [#allocation13], 1
    %1060 = vsyncpa [#allocation8], 1
    %s1061 = scalar_lea.sflag [#allocation8], 1
    %1062 = vsyncpa %s1061, 1

</llo_original>
